<compile_context>
chip_gen: v5e
topology: v5e:2x2
jax: 0.10.0
libtpu: 0.0.40
codegen_flags: <defaults>
</compile_context>

<pallas_src>
import math
import numpy as np
import jax
import jax.numpy as jnp
from jax.experimental import pallas as pl
from jax.experimental.pallas import tpu as pltpu


# ----------------------------------------------------------------------------
# Deterministic parameter construction (mirrors utils.initDCTKernel exactly).
# Returns (N*N, 1, N, N) — PyTorch conv2d weight layout.  Used only for the
# reference check; the kernel uses the separable 1-D factors below.
# ----------------------------------------------------------------------------
def init_dct_kernel(N: int) -> np.ndarray:
    kernel = np.zeros((N, N, N * N))
    cnum = 0
    for i in range(N):
        for j in range(N):
            ivec = np.linspace(0.5 * math.pi / N * i, (N - 0.5) * math.pi / N * i, num=N)
            ivec = np.cos(ivec)
            jvec = np.linspace(0.5 * math.pi / N * j, (N - 0.5) * math.pi / N * j, num=N)
            jvec = np.cos(jvec)
            slc = np.outer(ivec, jvec)
            if i == 0 and j == 0:
                slc = slc / N
            elif i * j == 0:
                slc = slc * np.sqrt(2) / N
            else:
                slc = slc * 2.0 / N
            kernel[:, :, cnum] = slc
            cnum += 1
    kernel = kernel[np.newaxis, :]                      # (1, N, N, N*N)
    kernel = np.transpose(kernel, (3, 0, 1, 2))          # (N*N, 1, N, N)
    return kernel


def init_dct_factors(N: int) -> np.ndarray:
    """1-D factors u (N, N) with u[i] ⊗ u[j] == initDCTKernel(N)[i*N+j, 0]."""
    u = np.zeros((N, N))
    for i in range(N):
        vec = np.cos(np.linspace(0.5 * math.pi / N * i,
                                 (N - 0.5) * math.pi / N * i, num=N))
        if i == 0:
            u[i] = vec / math.sqrt(N)
        else:
            u[i] = vec * (math.sqrt(2.0) / math.sqrt(N))
    return u


# ----------------------------------------------------------------------------
# Tile / VMEM planning.
# ----------------------------------------------------------------------------
def _plan_tiles(H: int, W: int, ksz: int):
    n = ksz
    pad = n - 1
    OH, OW = H + pad, W + pad
    C_out = n * n
    Wp = W + 2 * pad

    # ~2 MiB output block target (double-buffered by the pipeline) — small
    # enough for v7x's 64 MiB physical / v5e's tight limits, large enough to
    # amortize the ~0.35 us per-grid-step overhead.
    bytes_out_row = C_out * OW * 4
    max_rows = max(8, (2 << 20) // bytes_out_row)
    max_rows = min(max_rows, 512)
    if OH <= max_rows:
        toh = OH                               # single full-height tile (legal)
    else:
        toh = max(8, (max_rows // 8) * 8)      # multiple of 8 keeps BlockSpec legal

    T = -(-OH // toh)                          # ceil-div
    Hp = T * toh + pad                         # padded rows incl. tile overrun
    hb = toh + pad                             # band height incl. halo

    # Explicit VMEM footprint (bytes): padded-image scratch + input blocks
    # (counted double-buffered to be safe even if Buffered(1) falls back) +
    # double-buffered output blocks + materialized slice temporaries.
    scratch_b = Hp * Wp * 4
    inp_b = 2 * H * W * 4
    outp_b = 2 * C_out * toh * OW * 4
    temps_b = 2 * (n + 2) * hb * OW * 4
    footprint = scratch_b + inp_b + outp_b + temps_b
    vmem_limit = int(footprint * 1.4) + (4 << 20)
    vmem_limit = max(vmem_limit, 32 << 20)
    vmem_limit = min(vmem_limit, 60 << 20)     # stay under v7x's 64 MiB physical
    return toh, T, Hp, Wp, hb, vmem_limit


# ----------------------------------------------------------------------------
# Pallas kernel: separable DCT conv on one (batch, row-tile) block.
#   img_ref: (1, H, W)  raw image, resident per batch
#   out_ref: (1, ksz*ksz, toh, OW) NCHW output tile (lane dim = image width)
#   pad_ref: (Hp, Wp)   persistent VMEM scratch, zero-padded image per batch
# ----------------------------------------------------------------------------
def _make_dct_kernel(ksz: int, H: int, W: int, toh: int, T: int,
                     Hp: int, Wp: int, ow: int, u: np.ndarray):
    n = ksz
    pad = n - 1
    hb = toh + pad
    half = n // 2
    odd = (n % 2 == 1)
    uc = [[float(u[a, b]) for b in range(n)] for a in range(n)]

    def wsum(terms):
        # Weighted sum of (array, python-float coefficient) pairs; skips zeros.
        acc = None
        for a, c in terms:
            if c == 0.0:
                continue
            contrib = a * c
            acc = contrib if acc is None else acc + contrib
        if acc is None:
            acc = terms[0][0] * 0.0
        return acc

    def kernel(img_ref, out_ref, pad_ref):
        t = pl.program_id(1)

        # Build the zero-padded image once per batch (first row tile).  Row
        # tiles of a batch run sequentially (axis 1 is "arbitrary"), so the
        # scratch stays valid for every subsequent tile of this batch.
        @pl.when(t == 0)
        def _():
            pad_ref[...] = jnp.zeros_like(pad_ref)
            pad_ref[pl.ds(pad, H), pl.ds(pad, W)] = (
                img_ref[0, :, :].astype(pad_ref.dtype))

        if T == 1:
            r0 = 0
        else:
            r0 = pl.multiple_of(t * toh, 8)   # toh is a multiple of 8 when T > 1

        # ---- width pass (lane shifts) with the cosine even/odd butterfly ----
        # window_k = padded[r0:r0+hb, k:k+OW];  u[j, n-1-k] = (-1)^j u[j, k]
        ws, wd = [], []
        for k in range(half):
            a = pad_ref[pl.ds(r0, hb), pl.ds(k, ow)]
            b = pad_ref[pl.ds(r0, hb), pl.ds(n - 1 - k, ow)]
            ws.append(a + b)
            wd.append(a - b)
        wm = pad_ref[pl.ds(r0, hb), pl.ds(half, ow)] if odd else None

        for j in range(n):
            even_j = (j % 2 == 0)
            src = ws if even_j else wd
            terms = [(src[k], uc[j][k]) for k in range(half)]
            if odd and even_j:
                terms.append((wm, uc[j][half]))
            tj = wsum(terms)                                   # (hb, ow)

            # ---- height pass (sublane shifts), same butterfly ---------------
            hs, hd = [], []
            for k in range(half):
                a = tj[k:k + toh, :]
                b = tj[n - 1 - k:n - 1 - k + toh, :]
                hs.append(a + b)
                hd.append(a - b)
            hm = tj[half:half + toh, :] if odd else None

            for i in range(n):
                even_i = (i % 2 == 0)
                src2 = hs if even_i else hd
                terms2 = [(src2[k], uc[i][k]) for k in range(half)]
                if odd and even_i:
                    terms2.append((hm, uc[i][half]))
                acc = wsum(terms2)                             # (toh, ow)
                out_ref[0, i * n + j, :, :] = acc.astype(out_ref.dtype)

    return kernel


def dct_forward(x: jnp.ndarray, ksz: int) -> jnp.ndarray:
    """Equivalent of DCT(ksz).forward(x) for x of shape (B, 1, H, W) -> NCHW out."""
    B, C, H, W = x.shape
    assert C == 1, "DCT conv weight has in_channels=1"
    n = ksz
    pad = n - 1
    OH, OW = H + pad, W + pad
    C_out = n * n

    toh, T, Hp, Wp, hb, vmem_limit = _plan_tiles(H, W, ksz)

    u = init_dct_factors(ksz).astype(np.float32)
    kernel = _make_dct_kernel(ksz, H, W, toh, T, Hp, Wp, OW, u)

    ximg = x[:, 0]   # (B, H, W); squeeze of a size-1 dim — no HBM round trip

    def build(pipeline_mode):
        kwargs = {} if pipeline_mode is None else {"pipeline_mode": pipeline_mode}
        # Whole raw image per batch; block index only changes with the batch
        # axis, so it is DMA'd once per batch and stays resident in VMEM.
        in_spec = pl.BlockSpec((1, H, W), lambda b, t: (b, 0, 0), **kwargs)
        return pl.pallas_call(
            kernel,
            out_shape=jax.ShapeDtypeStruct((B, C_out, OH, OW), jnp.float32),
            grid_spec=pltpu.PrefetchScalarGridSpec(
                num_scalar_prefetch=0,
                grid=(B, T),
                in_specs=[in_spec],
                out_specs=pl.BlockSpec((1, C_out, toh, OW),
                                       lambda b, t: (b, 0, t, 0)),
                scratch_shapes=[pltpu.VMEM((Hp, Wp), jnp.float32)],
            ),
            compiler_params=pltpu.CompilerParams(
                dimension_semantics=("parallel", "arbitrary"),
                vmem_limit_bytes=vmem_limit,
            ),
        )

    # TODO(synk): for very large images (padded image >> VMEM) switch to a
    # halo-banded manual-DMA input path (memory_space=pl.ANY + make_async_copy
    # of a (toh+ksz-1, Wp) band) instead of a per-batch resident image.
    # TODO(synk): for workloads with OW << 128, repack channels x width into the
    # lane axis to avoid masked partial stores (conditional per the review).
    try:
        out = build(pl.Buffered(1))(ximg)   # single-buffer the resident input
    except Exception:
        out = build(None)(ximg)             # fallback: default double buffering
    return out


if __name__ == "__main__":
    ksz = 4
    B, H, W = 2, 16, 16

    key = jax.random.PRNGKey(0)
    x = jax.random.normal(key, (B, 1, H, W), dtype=jnp.float32)

    # Sanity: the separable factors reproduce the module's 2-D DCT basis exactly.
    u = init_dct_factors(ksz)
    w_np = init_dct_kernel(ksz)                                   # (16, 1, 4, 4)
    w_sep = np.einsum("ia,jb->ijab", u, u).reshape(ksz * ksz, 1, ksz, ksz)
    np.testing.assert_allclose(w_sep, w_np, rtol=1e-12, atol=1e-12)

    out = dct_forward(x, ksz)
    out = jax.block_until_ready(out)

    # Reference check against XLA's conv (same semantics as F.conv2d, padding=ksz-1)
    ref = jax.lax.conv_general_dilated(
        x, jnp.asarray(w_np, dtype=jnp.float32),
        window_strides=(1, 1),
        padding=[(ksz - 1, ksz - 1), (ksz - 1, ksz - 1)],
        dimension_numbers=("NCHW", "OIHW", "NCHW"),
    )
    assert out.shape == (B, ksz * ksz, H + ksz - 1, W + ksz - 1)
    np.testing.assert_allclose(np.asarray(out), np.asarray(ref), rtol=1e-4, atol=1e-4)

    print("KERNEL_OK")
</pallas_src>

<mosaic_0001>
module attributes {stable_mosaic.version = 11 : i64} {
  func.func @kernel(%arg0: i32, %arg1: i32, %arg2: memref<1x16x16xf32, #tpu.memory_space<vmem>>, %arg3: memref<1x16x19x19xf32, #tpu.memory_space<vmem>>, %arg4: memref<22x22xf32, #tpu.memory_space<vmem>>) attributes {dimension_semantics = [#tpu.dimension_semantics<parallel>, #tpu.dimension_semantics<arbitrary>], iteration_bounds = array<i64: 2, 1>, scalar_prefetch = 0 : i64, scratch_operands = 1 : i64, tpu.core_type = #tpu.core_type<tc>, window_params = [{pipeline_mode = #tpu.pipeline_mode<synchronous>, transform_indices = @transform_0, window_bounds = array<i64: 1, 16, 16>}, {transform_indices = @transform_1, window_bounds = array<i64: 1, 16, 19, 19>}]} {
    %c0_i32 = arith.constant 0 : i32
    %0 = arith.cmpi eq, %arg1, %c0_i32 : i32
    %1 = arith.extui %0 : i1 to i32
    %c0_i32_0 = arith.constant 0 : i32
    %2 = arith.cmpi ne, %1, %c0_i32_0 : i32
    scf.if %2 {
      %cst_96 = arith.constant 0.000000e+00 : f32
      %191 = vector.broadcast %cst_96 : f32 to vector<22x22xf32>
      %c0_97 = arith.constant 0 : index
      %c0_98 = arith.constant 0 : index
      %192 = vector.load %arg4[%c0_97, %c0_98] : memref<22x22xf32, #tpu.memory_space<vmem>>, vector<22x22xf32>
      tpu.vector_store %arg4[%c0_97, %c0_98], %191 {strides = array<i32>} : memref<22x22xf32, #tpu.memory_space<vmem>>, vector<22x22xf32>,
      %c0_99 = arith.constant 0 : index
      %c0_100 = arith.constant 0 : index
      %c0_101 = arith.constant 0 : index
      %193 = vector.load %arg2[%c0_99, %c0_100, %c0_101] : memref<1x16x16xf32, #tpu.memory_space<vmem>>, vector<1x16x16xf32>
      %194 = vector.shape_cast %193 : vector<1x16x16xf32> to vector<16x16xf32>
      %c3_102 = arith.constant 3 : index
      %c3_103 = arith.constant 3 : index
      %195 = vector.load %arg4[%c3_102, %c3_103] : memref<22x22xf32, #tpu.memory_space<vmem>>, vector<16x16xf32>
      tpu.vector_store %arg4[%c3_102, %c3_103], %194 {strides = array<i32>} : memref<22x22xf32, #tpu.memory_space<vmem>>, vector<16x16xf32>,
    } else {
    }
    %c0 = arith.constant 0 : index
    %c0_1 = arith.constant 0 : index
    %3 = vector.load %arg4[%c0, %c0_1] : memref<22x22xf32, #tpu.memory_space<vmem>>, vector<22x19xf32>
    %c0_2 = arith.constant 0 : index
    %c3 = arith.constant 3 : index
    %4 = vector.load %arg4[%c0_2, %c3] : memref<22x22xf32, #tpu.memory_space<vmem>>, vector<22x19xf32>
    %5 = arith.addf %3, %4 : vector<22x19xf32>
    %6 = arith.subf %3, %4 : vector<22x19xf32>
    %c0_3 = arith.constant 0 : index
    %c1 = arith.constant 1 : index
    %7 = vector.load %arg4[%c0_3, %c1] : memref<22x22xf32, #tpu.memory_space<vmem>>, vector<22x19xf32>
    %c0_4 = arith.constant 0 : index
    %c2 = arith.constant 2 : index
    %8 = vector.load %arg4[%c0_4, %c2] : memref<22x22xf32, #tpu.memory_space<vmem>>, vector<22x19xf32>
    %9 = arith.addf %7, %8 : vector<22x19xf32>
    %10 = arith.subf %7, %8 : vector<22x19xf32>
    %cst = arith.constant 5.000000e-01 : f32
    %11 = vector.broadcast %cst : f32 to vector<22x19xf32>
    %12 = arith.mulf %5, %11 : vector<22x19xf32>
    %cst_5 = arith.constant 5.000000e-01 : f32
    %13 = vector.broadcast %cst_5 : f32 to vector<22x19xf32>
    %14 = arith.mulf %9, %13 : vector<22x19xf32>
    %15 = arith.addf %12, %14 : vector<22x19xf32>
    %16 = vector.extract_strided_slice %15 {offsets = [0, 0], sizes = [19, 19], strides = [1, 1]} : vector<22x19xf32> to vector<19x19xf32>
    %17 = vector.extract_strided_slice %15 {offsets = [3, 0], sizes = [19, 19], strides = [1, 1]} : vector<22x19xf32> to vector<19x19xf32>
    %18 = arith.addf %16, %17 : vector<19x19xf32>
    %19 = arith.subf %16, %17 : vector<19x19xf32>
    %20 = vector.extract_strided_slice %15 {offsets = [1, 0], sizes = [19, 19], strides = [1, 1]} : vector<22x19xf32> to vector<19x19xf32>
    %21 = vector.extract_strided_slice %15 {offsets = [2, 0], sizes = [19, 19], strides = [1, 1]} : vector<22x19xf32> to vector<19x19xf32>
    %22 = arith.addf %20, %21 : vector<19x19xf32>
    %23 = arith.subf %20, %21 : vector<19x19xf32>
    %cst_6 = arith.constant 5.000000e-01 : f32
    %24 = vector.broadcast %cst_6 : f32 to vector<19x19xf32>
    %25 = arith.mulf %18, %24 : vector<19x19xf32>
    %cst_7 = arith.constant 5.000000e-01 : f32
    %26 = vector.broadcast %cst_7 : f32 to vector<19x19xf32>
    %27 = arith.mulf %22, %26 : vector<19x19xf32>
    %28 = arith.addf %25, %27 : vector<19x19xf32>
    %c0_8 = arith.constant 0 : index
    %c0_9 = arith.constant 0 : index
    %c0_10 = arith.constant 0 : index
    %c0_11 = arith.constant 0 : index
    %29 = vector.load %arg3[%c0_8, %c0_9, %c0_10, %c0_11] : memref<1x16x19x19xf32, #tpu.memory_space<vmem>>, vector<1x1x19x19xf32>
    %30 = vector.shape_cast %29 : vector<1x1x19x19xf32> to vector<19x19xf32>
    %31 = vector.shape_cast %28 : vector<19x19xf32> to vector<1x1x19x19xf32>
    tpu.vector_store %arg3[%c0_8, %c0_9, %c0_10, %c0_11], %31 {strides = array<i32>} : memref<1x16x19x19xf32, #tpu.memory_space<vmem>>, vector<1x1x19x19xf32>,
    %cst_12 = arith.constant 0.653281509 : f32
    %32 = vector.broadcast %cst_12 : f32 to vector<19x19xf32>
    %33 = arith.mulf %19, %32 : vector<19x19xf32>
    %cst_13 = arith.constant 0.270598054 : f32
    %34 = vector.broadcast %cst_13 : f32 to vector<19x19xf32>
    %35 = arith.mulf %23, %34 : vector<19x19xf32>
    %36 = arith.addf %33, %35 : vector<19x19xf32>
    %c0_14 = arith.constant 0 : index
    %c4 = arith.constant 4 : index
    %c0_15 = arith.constant 0 : index
    %c0_16 = arith.constant 0 : index
    %37 = vector.load %arg3[%c0_14, %c4, %c0_15, %c0_16] : memref<1x16x19x19xf32, #tpu.memory_space<vmem>>, vector<1x1x19x19xf32>
    %38 = vector.shape_cast %37 : vector<1x1x19x19xf32> to vector<19x19xf32>
    %39 = vector.shape_cast %36 : vector<19x19xf32> to vector<1x1x19x19xf32>
    tpu.vector_store %arg3[%c0_14, %c4, %c0_15, %c0_16], %39 {strides = array<i32>} : memref<1x16x19x19xf32, #tpu.memory_space<vmem>>, vector<1x1x19x19xf32>,
    %cst_17 = arith.constant 5.000000e-01 : f32
    %40 = vector.broadcast %cst_17 : f32 to vector<19x19xf32>
    %41 = arith.mulf %18, %40 : vector<19x19xf32>
    %cst_18 = arith.constant -5.000000e-01 : f32
    %42 = vector.broadcast %cst_18 : f32 to vector<19x19xf32>
    %43 = arith.mulf %22, %42 : vector<19x19xf32>
    %44 = arith.addf %41, %43 : vector<19x19xf32>
    %c0_19 = arith.constant 0 : index
    %c8 = arith.constant 8 : index
    %c0_20 = arith.constant 0 : index
    %c0_21 = arith.constant 0 : index
    %45 = vector.load %arg3[%c0_19, %c8, %c0_20, %c0_21] : memref<1x16x19x19xf32, #tpu.memory_space<vmem>>, vector<1x1x19x19xf32>
    %46 = vector.shape_cast %45 : vector<1x1x19x19xf32> to vector<19x19xf32>
    %47 = vector.shape_cast %44 : vector<19x19xf32> to vector<1x1x19x19xf32>
    tpu.vector_store %arg3[%c0_19, %c8, %c0_20, %c0_21], %47 {strides = array<i32>} : memref<1x16x19x19xf32, #tpu.memory_space<vmem>>, vector<1x1x19x19xf32>,
    %cst_22 = arith.constant 0.270598054 : f32
    %48 = vector.broadcast %cst_22 : f32 to vector<19x19xf32>
    %49 = arith.mulf %19, %48 : vector<19x19xf32>
    %cst_23 = arith.constant -0.653281509 : f32
    %50 = vector.broadcast %cst_23 : f32 to vector<19x19xf32>
    %51 = arith.mulf %23, %50 : vector<19x19xf32>
    %52 = arith.addf %49, %51 : vector<19x19xf32>
    %c0_24 = arith.constant 0 : index
    %c12 = arith.constant 12 : index
    %c0_25 = arith.constant 0 : index
    %c0_26 = arith.constant 0 : index
    %53 = vector.load %arg3[%c0_24, %c12, %c0_25, %c0_26] : memref<1x16x19x19xf32, #tpu.memory_space<vmem>>, vector<1x1x19x19xf32>
    %54 = vector.shape_cast %53 : vector<1x1x19x19xf32> to vector<19x19xf32>
    %55 = vector.shape_cast %52 : vector<19x19xf32> to vector<1x1x19x19xf32>
    tpu.vector_store %arg3[%c0_24, %c12, %c0_25, %c0_26], %55 {strides = array<i32>} : memref<1x16x19x19xf32, #tpu.memory_space<vmem>>, vector<1x1x19x19xf32>,
    %cst_27 = arith.constant 0.653281509 : f32
    %56 = vector.broadcast %cst_27 : f32 to vector<22x19xf32>
    %57 = arith.mulf %6, %56 : vector<22x19xf32>
    %cst_28 = arith.constant 0.270598054 : f32
    %58 = vector.broadcast %cst_28 : f32 to vector<22x19xf32>
    %59 = arith.mulf %10, %58 : vector<22x19xf32>
    %60 = arith.addf %57, %59 : vector<22x19xf32>
    %61 = vector.extract_strided_slice %60 {offsets = [0, 0], sizes = [19, 19], strides = [1, 1]} : vector<22x19xf32> to vector<19x19xf32>
    %62 = vector.extract_strided_slice %60 {offsets = [3, 0], sizes = [19, 19], strides = [1, 1]} : vector<22x19xf32> to vector<19x19xf32>
    %63 = arith.addf %61, %62 : vector<19x19xf32>
    %64 = arith.subf %61, %62 : vector<19x19xf32>
    %65 = vector.extract_strided_slice %60 {offsets = [1, 0], sizes = [19, 19], strides = [1, 1]} : vector<22x19xf32> to vector<19x19xf32>
    %66 = vector.extract_strided_slice %60 {offsets = [2, 0], sizes = [19, 19], strides = [1, 1]} : vector<22x19xf32> to vector<19x19xf32>
    %67 = arith.addf %65, %66 : vector<19x19xf32>
    %68 = arith.subf %65, %66 : vector<19x19xf32>
    %cst_29 = arith.constant 5.000000e-01 : f32
    %69 = vector.broadcast %cst_29 : f32 to vector<19x19xf32>
    %70 = arith.mulf %63, %69 : vector<19x19xf32>
    %cst_30 = arith.constant 5.000000e-01 : f32
    %71 = vector.broadcast %cst_30 : f32 to vector<19x19xf32>
    %72 = arith.mulf %67, %71 : vector<19x19xf32>
    %73 = arith.addf %70, %72 : vector<19x19xf32>
    %c0_31 = arith.constant 0 : index
    %c1_32 = arith.constant 1 : index
    %c0_33 = arith.constant 0 : index
    %c0_34 = arith.constant 0 : index
    %74 = vector.load %arg3[%c0_31, %c1_32, %c0_33, %c0_34] : memref<1x16x19x19xf32, #tpu.memory_space<vmem>>, vector<1x1x19x19xf32>
    %75 = vector.shape_cast %74 : vector<1x1x19x19xf32> to vector<19x19xf32>
    %76 = vector.shape_cast %73 : vector<19x19xf32> to vector<1x1x19x19xf32>
    tpu.vector_store %arg3[%c0_31, %c1_32, %c0_33, %c0_34], %76 {strides = array<i32>} : memref<1x16x19x19xf32, #tpu.memory_space<vmem>>, vector<1x1x19x19xf32>,
    %cst_35 = arith.constant 0.653281509 : f32
    %77 = vector.broadcast %cst_35 : f32 to vector<19x19xf32>
    %78 = arith.mulf %64, %77 : vector<19x19xf32>
    %cst_36 = arith.constant 0.270598054 : f32
    %79 = vector.broadcast %cst_36 : f32 to vector<19x19xf32>
    %80 = arith.mulf %68, %79 : vector<19x19xf32>
    %81 = arith.addf %78, %80 : vector<19x19xf32>
    %c0_37 = arith.constant 0 : index
    %c5 = arith.constant 5 : index
    %c0_38 = arith.constant 0 : index
    %c0_39 = arith.constant 0 : index
    %82 = vector.load %arg3[%c0_37, %c5, %c0_38, %c0_39] : memref<1x16x19x19xf32, #tpu.memory_space<vmem>>, vector<1x1x19x19xf32>
    %83 = vector.shape_cast %82 : vector<1x1x19x19xf32> to vector<19x19xf32>
    %84 = vector.shape_cast %81 : vector<19x19xf32> to vector<1x1x19x19xf32>
    tpu.vector_store %arg3[%c0_37, %c5, %c0_38, %c0_39], %84 {strides = array<i32>} : memref<1x16x19x19xf32, #tpu.memory_space<vmem>>, vector<1x1x19x19xf32>,
    %cst_40 = arith.constant 5.000000e-01 : f32
    %85 = vector.broadcast %cst_40 : f32 to vector<19x19xf32>
    %86 = arith.mulf %63, %85 : vector<19x19xf32>
    %cst_41 = arith.constant -5.000000e-01 : f32
    %87 = vector.broadcast %cst_41 : f32 to vector<19x19xf32>
    %88 = arith.mulf %67, %87 : vector<19x19xf32>
    %89 = arith.addf %86, %88 : vector<19x19xf32>
    %c0_42 = arith.constant 0 : index
    %c9 = arith.constant 9 : index
    %c0_43 = arith.constant 0 : index
    %c0_44 = arith.constant 0 : index
    %90 = vector.load %arg3[%c0_42, %c9, %c0_43, %c0_44] : memref<1x16x19x19xf32, #tpu.memory_space<vmem>>, vector<1x1x19x19xf32>
    %91 = vector.shape_cast %90 : vector<1x1x19x19xf32> to vector<19x19xf32>
    %92 = vector.shape_cast %89 : vector<19x19xf32> to vector<1x1x19x19xf32>
    tpu.vector_store %arg3[%c0_42, %c9, %c0_43, %c0_44], %92 {strides = array<i32>} : memref<1x16x19x19xf32, #tpu.memory_space<vmem>>, vector<1x1x19x19xf32>,
    %cst_45 = arith.constant 0.270598054 : f32
    %93 = vector.broadcast %cst_45 : f32 to vector<19x19xf32>
    %94 = arith.mulf %64, %93 : vector<19x19xf32>
    %cst_46 = arith.constant -0.653281509 : f32
    %95 = vector.broadcast %cst_46 : f32 to vector<19x19xf32>
    %96 = arith.mulf %68, %95 : vector<19x19xf32>
    %97 = arith.addf %94, %96 : vector<19x19xf32>
    %c0_47 = arith.constant 0 : index
    %c13 = arith.constant 13 : index
    %c0_48 = arith.constant 0 : index
    %c0_49 = arith.constant 0 : index
    %98 = vector.load %arg3[%c0_47, %c13, %c0_48, %c0_49] : memref<1x16x19x19xf32, #tpu.memory_space<vmem>>, vector<1x1x19x19xf32>
    %99 = vector.shape_cast %98 : vector<1x1x19x19xf32> to vector<19x19xf32>
    %100 = vector.shape_cast %97 : vector<19x19xf32> to vector<1x1x19x19xf32>
    tpu.vector_store %arg3[%c0_47, %c13, %c0_48, %c0_49], %100 {strides = array<i32>} : memref<1x16x19x19xf32, #tpu.memory_space<vmem>>, vector<1x1x19x19xf32>,
    %cst_50 = arith.constant 5.000000e-01 : f32
    %101 = vector.broadcast %cst_50 : f32 to vector<22x19xf32>
    %102 = arith.mulf %5, %101 : vector<22x19xf32>
    %cst_51 = arith.constant -5.000000e-01 : f32
    %103 = vector.broadcast %cst_51 : f32 to vector<22x19xf32>
    %104 = arith.mulf %9, %103 : vector<22x19xf32>
    %105 = arith.addf %102, %104 : vector<22x19xf32>
    %106 = vector.extract_strided_slice %105 {offsets = [0, 0], sizes = [19, 19], strides = [1, 1]} : vector<22x19xf32> to vector<19x19xf32>
    %107 = vector.extract_strided_slice %105 {offsets = [3, 0], sizes = [19, 19], strides = [1, 1]} : vector<22x19xf32> to vector<19x19xf32>
    %108 = arith.addf %106, %107 : vector<19x19xf32>
    %109 = arith.subf %106, %107 : vector<19x19xf32>
    %110 = vector.extract_strided_slice %105 {offsets = [1, 0], sizes = [19, 19], strides = [1, 1]} : vector<22x19xf32> to vector<19x19xf32>
    %111 = vector.extract_strided_slice %105 {offsets = [2, 0], sizes = [19, 19], strides = [1, 1]} : vector<22x19xf32> to vector<19x19xf32>
    %112 = arith.addf %110, %111 : vector<19x19xf32>
    %113 = arith.subf %110, %111 : vector<19x19xf32>
    %cst_52 = arith.constant 5.000000e-01 : f32
    %114 = vector.broadcast %cst_52 : f32 to vector<19x19xf32>
    %115 = arith.mulf %108, %114 : vector<19x19xf32>
    %cst_53 = arith.constant 5.000000e-01 : f32
    %116 = vector.broadcast %cst_53 : f32 to vector<19x19xf32>
    %117 = arith.mulf %112, %116 : vector<19x19xf32>
    %118 = arith.addf %115, %117 : vector<19x19xf32>
    %c0_54 = arith.constant 0 : index
    %c2_55 = arith.constant 2 : index
    %c0_56 = arith.constant 0 : index
    %c0_57 = arith.constant 0 : index
    %119 = vector.load %arg3[%c0_54, %c2_55, %c0_56, %c0_57] : memref<1x16x19x19xf32, #tpu.memory_space<vmem>>, vector<1x1x19x19xf32>
    %120 = vector.shape_cast %119 : vector<1x1x19x19xf32> to vector<19x19xf32>
    %121 = vector.shape_cast %118 : vector<19x19xf32> to vector<1x1x19x19xf32>
    tpu.vector_store %arg3[%c0_54, %c2_55, %c0_56, %c0_57], %121 {strides = array<i32>} : memref<1x16x19x19xf32, #tpu.memory_space<vmem>>, vector<1x1x19x19xf32>,
    %cst_58 = arith.constant 0.653281509 : f32
    %122 = vector.broadcast %cst_58 : f32 to vector<19x19xf32>
    %123 = arith.mulf %109, %122 : vector<19x19xf32>
    %cst_59 = arith.constant 0.270598054 : f32
    %124 = vector.broadcast %cst_59 : f32 to vector<19x19xf32>
    %125 = arith.mulf %113, %124 : vector<19x19xf32>
    %126 = arith.addf %123, %125 : vector<19x19xf32>
    %c0_60 = arith.constant 0 : index
    %c6 = arith.constant 6 : index
    %c0_61 = arith.constant 0 : index
    %c0_62 = arith.constant 0 : index
    %127 = vector.load %arg3[%c0_60, %c6, %c0_61, %c0_62] : memref<1x16x19x19xf32, #tpu.memory_space<vmem>>, vector<1x1x19x19xf32>
    %128 = vector.shape_cast %127 : vector<1x1x19x19xf32> to vector<19x19xf32>
    %129 = vector.shape_cast %126 : vector<19x19xf32> to vector<1x1x19x19xf32>
    tpu.vector_store %arg3[%c0_60, %c6, %c0_61, %c0_62], %129 {strides = array<i32>} : memref<1x16x19x19xf32, #tpu.memory_space<vmem>>, vector<1x1x19x19xf32>,
    %cst_63 = arith.constant 5.000000e-01 : f32
    %130 = vector.broadcast %cst_63 : f32 to vector<19x19xf32>
    %131 = arith.mulf %108, %130 : vector<19x19xf32>
    %cst_64 = arith.constant -5.000000e-01 : f32
    %132 = vector.broadcast %cst_64 : f32 to vector<19x19xf32>
    %133 = arith.mulf %112, %132 : vector<19x19xf32>
    %134 = arith.addf %131, %133 : vector<19x19xf32>
    %c0_65 = arith.constant 0 : index
    %c10 = arith.constant 10 : index
    %c0_66 = arith.constant 0 : index
    %c0_67 = arith.constant 0 : index
    %135 = vector.load %arg3[%c0_65, %c10, %c0_66, %c0_67] : memref<1x16x19x19xf32, #tpu.memory_space<vmem>>, vector<1x1x19x19xf32>
    %136 = vector.shape_cast %135 : vector<1x1x19x19xf32> to vector<19x19xf32>
    %137 = vector.shape_cast %134 : vector<19x19xf32> to vector<1x1x19x19xf32>
    tpu.vector_store %arg3[%c0_65, %c10, %c0_66, %c0_67], %137 {strides = array<i32>} : memref<1x16x19x19xf32, #tpu.memory_space<vmem>>, vector<1x1x19x19xf32>,
    %cst_68 = arith.constant 0.270598054 : f32
    %138 = vector.broadcast %cst_68 : f32 to vector<19x19xf32>
    %139 = arith.mulf %109, %138 : vector<19x19xf32>
    %cst_69 = arith.constant -0.653281509 : f32
    %140 = vector.broadcast %cst_69 : f32 to vector<19x19xf32>
    %141 = arith.mulf %113, %140 : vector<19x19xf32>
    %142 = arith.addf %139, %141 : vector<19x19xf32>
    %c0_70 = arith.constant 0 : index
    %c14 = arith.constant 14 : index
    %c0_71 = arith.constant 0 : index
    %c0_72 = arith.constant 0 : index
    %143 = vector.load %arg3[%c0_70, %c14, %c0_71, %c0_72] : memref<1x16x19x19xf32, #tpu.memory_space<vmem>>, vector<1x1x19x19xf32>
    %144 = vector.shape_cast %143 : vector<1x1x19x19xf32> to vector<19x19xf32>
    %145 = vector.shape_cast %142 : vector<19x19xf32> to vector<1x1x19x19xf32>
    tpu.vector_store %arg3[%c0_70, %c14, %c0_71, %c0_72], %145 {strides = array<i32>} : memref<1x16x19x19xf32, #tpu.memory_space<vmem>>, vector<1x1x19x19xf32>,
    %cst_73 = arith.constant 0.270598054 : f32
    %146 = vector.broadcast %cst_73 : f32 to vector<22x19xf32>
    %147 = arith.mulf %6, %146 : vector<22x19xf32>
    %cst_74 = arith.constant -0.653281509 : f32
    %148 = vector.broadcast %cst_74 : f32 to vector<22x19xf32>
    %149 = arith.mulf %10, %148 : vector<22x19xf32>
    %150 = arith.addf %147, %149 : vector<22x19xf32>
    %151 = vector.extract_strided_slice %150 {offsets = [0, 0], sizes = [19, 19], strides = [1, 1]} : vector<22x19xf32> to vector<19x19xf32>
    %152 = vector.extract_strided_slice %150 {offsets = [3, 0], sizes = [19, 19], strides = [1, 1]} : vector<22x19xf32> to vector<19x19xf32>
    %153 = arith.addf %151, %152 : vector<19x19xf32>
    %154 = arith.subf %151, %152 : vector<19x19xf32>
    %155 = vector.extract_strided_slice %150 {offsets = [1, 0], sizes = [19, 19], strides = [1, 1]} : vector<22x19xf32> to vector<19x19xf32>
    %156 = vector.extract_strided_slice %150 {offsets = [2, 0], sizes = [19, 19], strides = [1, 1]} : vector<22x19xf32> to vector<19x19xf32>
    %157 = arith.addf %155, %156 : vector<19x19xf32>
    %158 = arith.subf %155, %156 : vector<19x19xf32>
    %cst_75 = arith.constant 5.000000e-01 : f32
    %159 = vector.broadcast %cst_75 : f32 to vector<19x19xf32>
    %160 = arith.mulf %153, %159 : vector<19x19xf32>
    %cst_76 = arith.constant 5.000000e-01 : f32
    %161 = vector.broadcast %cst_76 : f32 to vector<19x19xf32>
    %162 = arith.mulf %157, %161 : vector<19x19xf32>
    %163 = arith.addf %160, %162 : vector<19x19xf32>
    %c0_77 = arith.constant 0 : index
    %c3_78 = arith.constant 3 : index
    %c0_79 = arith.constant 0 : index
    %c0_80 = arith.constant 0 : index
    %164 = vector.load %arg3[%c0_77, %c3_78, %c0_79, %c0_80] : memref<1x16x19x19xf32, #tpu.memory_space<vmem>>, vector<1x1x19x19xf32>
    %165 = vector.shape_cast %164 : vector<1x1x19x19xf32> to vector<19x19xf32>
    %166 = vector.shape_cast %163 : vector<19x19xf32> to vector<1x1x19x19xf32>
    tpu.vector_store %arg3[%c0_77, %c3_78, %c0_79, %c0_80], %166 {strides = array<i32>} : memref<1x16x19x19xf32, #tpu.memory_space<vmem>>, vector<1x1x19x19xf32>,
    %cst_81 = arith.constant 0.653281509 : f32
    %167 = vector.broadcast %cst_81 : f32 to vector<19x19xf32>
    %168 = arith.mulf %154, %167 : vector<19x19xf32>
    %cst_82 = arith.constant 0.270598054 : f32
    %169 = vector.broadcast %cst_82 : f32 to vector<19x19xf32>
    %170 = arith.mulf %158, %169 : vector<19x19xf32>
    %171 = arith.addf %168, %170 : vector<19x19xf32>
    %c0_83 = arith.constant 0 : index
    %c7 = arith.constant 7 : index
    %c0_84 = arith.constant 0 : index
    %c0_85 = arith.constant 0 : index
    %172 = vector.load %arg3[%c0_83, %c7, %c0_84, %c0_85] : memref<1x16x19x19xf32, #tpu.memory_space<vmem>>, vector<1x1x19x19xf32>
    %173 = vector.shape_cast %172 : vector<1x1x19x19xf32> to vector<19x19xf32>
    %174 = vector.shape_cast %171 : vector<19x19xf32> to vector<1x1x19x19xf32>
    tpu.vector_store %arg3[%c0_83, %c7, %c0_84, %c0_85], %174 {strides = array<i32>} : memref<1x16x19x19xf32, #tpu.memory_space<vmem>>, vector<1x1x19x19xf32>,
    %cst_86 = arith.constant 5.000000e-01 : f32
    %175 = vector.broadcast %cst_86 : f32 to vector<19x19xf32>
    %176 = arith.mulf %153, %175 : vector<19x19xf32>
    %cst_87 = arith.constant -5.000000e-01 : f32
    %177 = vector.broadcast %cst_87 : f32 to vector<19x19xf32>
    %178 = arith.mulf %157, %177 : vector<19x19xf32>
    %179 = arith.addf %176, %178 : vector<19x19xf32>
    %c0_88 = arith.constant 0 : index
    %c11 = arith.constant 11 : index
    %c0_89 = arith.constant 0 : index
    %c0_90 = arith.constant 0 : index
    %180 = vector.load %arg3[%c0_88, %c11, %c0_89, %c0_90] : memref<1x16x19x19xf32, #tpu.memory_space<vmem>>, vector<1x1x19x19xf32>
    %181 = vector.shape_cast %180 : vector<1x1x19x19xf32> to vector<19x19xf32>
    %182 = vector.shape_cast %179 : vector<19x19xf32> to vector<1x1x19x19xf32>
    tpu.vector_store %arg3[%c0_88, %c11, %c0_89, %c0_90], %182 {strides = array<i32>} : memref<1x16x19x19xf32, #tpu.memory_space<vmem>>, vector<1x1x19x19xf32>,
    %cst_91 = arith.constant 0.270598054 : f32
    %183 = vector.broadcast %cst_91 : f32 to vector<19x19xf32>
    %184 = arith.mulf %154, %183 : vector<19x19xf32>
    %cst_92 = arith.constant -0.653281509 : f32
    %185 = vector.broadcast %cst_92 : f32 to vector<19x19xf32>
    %186 = arith.mulf %158, %185 : vector<19x19xf32>
    %187 = arith.addf %184, %186 : vector<19x19xf32>
    %c0_93 = arith.constant 0 : index
    %c15 = arith.constant 15 : index
    %c0_94 = arith.constant 0 : index
    %c0_95 = arith.constant 0 : index
    %188 = vector.load %arg3[%c0_93, %c15, %c0_94, %c0_95] : memref<1x16x19x19xf32, #tpu.memory_space<vmem>>, vector<1x1x19x19xf32>
    %189 = vector.shape_cast %188 : vector<1x1x19x19xf32> to vector<19x19xf32>
    %190 = vector.shape_cast %187 : vector<19x19xf32> to vector<1x1x19x19xf32>
    tpu.vector_store %arg3[%c0_93, %c15, %c0_94, %c0_95], %190 {strides = array<i32>} : memref<1x16x19x19xf32, #tpu.memory_space<vmem>>, vector<1x1x19x19xf32>,
    return
  }
  func.func @transform_0(%arg0: i32, %arg1: i32) -> (i32, i32, i32) {
    %c0_i32 = arith.constant 0 : i32
    %c0_i32_0 = arith.constant 0 : i32
    %c0_i32_1 = arith.constant 0 : i32
    return %arg0, %c0_i32, %c0_i32_0 : i32, i32, i32
  }
  func.func @transform_1(%arg0: i32, %arg1: i32) -> (i32, i32, i32, i32) {
    %c0_i32 = arith.constant 0 : i32
    %c0_i32_0 = arith.constant 0 : i32
    %c0_i32_1 = arith.constant 0 : i32
    return %arg0, %c0_i32, %arg1, %c0_i32_0 : i32, i32, i32, i32
  }
}

module attributes {stable_mosaic.version = 11 : i64} {
  func.func @kernel(%arg0: i32, %arg1: i32, %arg2: memref<1x16x16xf32, #tpu.memory_space<vmem>>, %arg3: memref<1x16x19x19xf32, #tpu.memory_space<vmem>>, %arg4: memref<22x22xf32, #tpu.memory_space<vmem>>) attributes {dimension_semantics = [#tpu.dimension_semantics<parallel>, #tpu.dimension_semantics<arbitrary>], iteration_bounds = array<i64: 2, 1>, scalar_prefetch = 0 : i64, scratch_operands = 1 : i64, tpu.core_type = #tpu.core_type<tc>, window_params = [{transform_indices = @transform_0, window_bounds = array<i64: 1, 16, 16>}, {transform_indices = @transform_1, window_bounds = array<i64: 1, 16, 19, 19>}]} {
    %c0_i32 = arith.constant 0 : i32
    %0 = arith.cmpi eq, %arg1, %c0_i32 : i32
    %1 = arith.extui %0 : i1 to i32
    %c0_i32_0 = arith.constant 0 : i32
    %2 = arith.cmpi ne, %1, %c0_i32_0 : i32
    scf.if %2 {
      %cst_96 = arith.constant 0.000000e+00 : f32
      %191 = vector.broadcast %cst_96 : f32 to vector<22x22xf32>
      %c0_97 = arith.constant 0 : index
      %c0_98 = arith.constant 0 : index
      %192 = vector.load %arg4[%c0_97, %c0_98] : memref<22x22xf32, #tpu.memory_space<vmem>>, vector<22x22xf32>
      tpu.vector_store %arg4[%c0_97, %c0_98], %191 {strides = array<i32>} : memref<22x22xf32, #tpu.memory_space<vmem>>, vector<22x22xf32>,
      %c0_99 = arith.constant 0 : index
      %c0_100 = arith.constant 0 : index
      %c0_101 = arith.constant 0 : index
      %193 = vector.load %arg2[%c0_99, %c0_100, %c0_101] : memref<1x16x16xf32, #tpu.memory_space<vmem>>, vector<1x16x16xf32>
      %194 = vector.shape_cast %193 : vector<1x16x16xf32> to vector<16x16xf32>
      %c3_102 = arith.constant 3 : index
      %c3_103 = arith.constant 3 : index
      %195 = vector.load %arg4[%c3_102, %c3_103] : memref<22x22xf32, #tpu.memory_space<vmem>>, vector<16x16xf32>
      tpu.vector_store %arg4[%c3_102, %c3_103], %194 {strides = array<i32>} : memref<22x22xf32, #tpu.memory_space<vmem>>, vector<16x16xf32>,
    } else {
    }
    %c0 = arith.constant 0 : index
    %c0_1 = arith.constant 0 : index
    %3 = vector.load %arg4[%c0, %c0_1] : memref<22x22xf32, #tpu.memory_space<vmem>>, vector<22x19xf32>
    %c0_2 = arith.constant 0 : index
    %c3 = arith.constant 3 : index
    %4 = vector.load %arg4[%c0_2, %c3] : memref<22x22xf32, #tpu.memory_space<vmem>>, vector<22x19xf32>
    %5 = arith.addf %3, %4 : vector<22x19xf32>
    %6 = arith.subf %3, %4 : vector<22x19xf32>
    %c0_3 = arith.constant 0 : index
    %c1 = arith.constant 1 : index
    %7 = vector.load %arg4[%c0_3, %c1] : memref<22x22xf32, #tpu.memory_space<vmem>>, vector<22x19xf32>
    %c0_4 = arith.constant 0 : index
    %c2 = arith.constant 2 : index
    %8 = vector.load %arg4[%c0_4, %c2] : memref<22x22xf32, #tpu.memory_space<vmem>>, vector<22x19xf32>
    %9 = arith.addf %7, %8 : vector<22x19xf32>
    %10 = arith.subf %7, %8 : vector<22x19xf32>
    %cst = arith.constant 5.000000e-01 : f32
    %11 = vector.broadcast %cst : f32 to vector<22x19xf32>
    %12 = arith.mulf %5, %11 : vector<22x19xf32>
    %cst_5 = arith.constant 5.000000e-01 : f32
    %13 = vector.broadcast %cst_5 : f32 to vector<22x19xf32>
    %14 = arith.mulf %9, %13 : vector<22x19xf32>
    %15 = arith.addf %12, %14 : vector<22x19xf32>
    %16 = vector.extract_strided_slice %15 {offsets = [0, 0], sizes = [19, 19], strides = [1, 1]} : vector<22x19xf32> to vector<19x19xf32>
    %17 = vector.extract_strided_slice %15 {offsets = [3, 0], sizes = [19, 19], strides = [1, 1]} : vector<22x19xf32> to vector<19x19xf32>
    %18 = arith.addf %16, %17 : vector<19x19xf32>
    %19 = arith.subf %16, %17 : vector<19x19xf32>
    %20 = vector.extract_strided_slice %15 {offsets = [1, 0], sizes = [19, 19], strides = [1, 1]} : vector<22x19xf32> to vector<19x19xf32>
    %21 = vector.extract_strided_slice %15 {offsets = [2, 0], sizes = [19, 19], strides = [1, 1]} : vector<22x19xf32> to vector<19x19xf32>
    %22 = arith.addf %20, %21 : vector<19x19xf32>
    %23 = arith.subf %20, %21 : vector<19x19xf32>
    %cst_6 = arith.constant 5.000000e-01 : f32
    %24 = vector.broadcast %cst_6 : f32 to vector<19x19xf32>
    %25 = arith.mulf %18, %24 : vector<19x19xf32>
    %cst_7 = arith.constant 5.000000e-01 : f32
    %26 = vector.broadcast %cst_7 : f32 to vector<19x19xf32>
    %27 = arith.mulf %22, %26 : vector<19x19xf32>
    %28 = arith.addf %25, %27 : vector<19x19xf32>
    %c0_8 = arith.constant 0 : index
    %c0_9 = arith.constant 0 : index
    %c0_10 = arith.constant 0 : index
    %c0_11 = arith.constant 0 : index
    %29 = vector.load %arg3[%c0_8, %c0_9, %c0_10, %c0_11] : memref<1x16x19x19xf32, #tpu.memory_space<vmem>>, vector<1x1x19x19xf32>
    %30 = vector.shape_cast %29 : vector<1x1x19x19xf32> to vector<19x19xf32>
    %31 = vector.shape_cast %28 : vector<19x19xf32> to vector<1x1x19x19xf32>
    tpu.vector_store %arg3[%c0_8, %c0_9, %c0_10, %c0_11], %31 {strides = array<i32>} : memref<1x16x19x19xf32, #tpu.memory_space<vmem>>, vector<1x1x19x19xf32>,
    %cst_12 = arith.constant 0.653281509 : f32
    %32 = vector.broadcast %cst_12 : f32 to vector<19x19xf32>
    %33 = arith.mulf %19, %32 : vector<19x19xf32>
    %cst_13 = arith.constant 0.270598054 : f32
    %34 = vector.broadcast %cst_13 : f32 to vector<19x19xf32>
    %35 = arith.mulf %23, %34 : vector<19x19xf32>
    %36 = arith.addf %33, %35 : vector<19x19xf32>
    %c0_14 = arith.constant 0 : index
    %c4 = arith.constant 4 : index
    %c0_15 = arith.constant 0 : index
    %c0_16 = arith.constant 0 : index
    %37 = vector.load %arg3[%c0_14, %c4, %c0_15, %c0_16] : memref<1x16x19x19xf32, #tpu.memory_space<vmem>>, vector<1x1x19x19xf32>
    %38 = vector.shape_cast %37 : vector<1x1x19x19xf32> to vector<19x19xf32>
    %39 = vector.shape_cast %36 : vector<19x19xf32> to vector<1x1x19x19xf32>
    tpu.vector_store %arg3[%c0_14, %c4, %c0_15, %c0_16], %39 {strides = array<i32>} : memref<1x16x19x19xf32, #tpu.memory_space<vmem>>, vector<1x1x19x19xf32>,
    %cst_17 = arith.constant 5.000000e-01 : f32
    %40 = vector.broadcast %cst_17 : f32 to vector<19x19xf32>
    %41 = arith.mulf %18, %40 : vector<19x19xf32>
    %cst_18 = arith.constant -5.000000e-01 : f32
    %42 = vector.broadcast %cst_18 : f32 to vector<19x19xf32>
    %43 = arith.mulf %22, %42 : vector<19x19xf32>
    %44 = arith.addf %41, %43 : vector<19x19xf32>
    %c0_19 = arith.constant 0 : index
    %c8 = arith.constant 8 : index
    %c0_20 = arith.constant 0 : index
    %c0_21 = arith.constant 0 : index
    %45 = vector.load %arg3[%c0_19, %c8, %c0_20, %c0_21] : memref<1x16x19x19xf32, #tpu.memory_space<vmem>>, vector<1x1x19x19xf32>
    %46 = vector.shape_cast %45 : vector<1x1x19x19xf32> to vector<19x19xf32>
    %47 = vector.shape_cast %44 : vector<19x19xf32> to vector<1x1x19x19xf32>
    tpu.vector_store %arg3[%c0_19, %c8, %c0_20, %c0_21], %47 {strides = array<i32>} : memref<1x16x19x19xf32, #tpu.memory_space<vmem>>, vector<1x1x19x19xf32>,
    %cst_22 = arith.constant 0.270598054 : f32
    %48 = vector.broadcast %cst_22 : f32 to vector<19x19xf32>
    %49 = arith.mulf %19, %48 : vector<19x19xf32>
    %cst_23 = arith.constant -0.653281509 : f32
    %50 = vector.broadcast %cst_23 : f32 to vector<19x19xf32>
    %51 = arith.mulf %23, %50 : vector<19x19xf32>
    %52 = arith.addf %49, %51 : vector<19x19xf32>
    %c0_24 = arith.constant 0 : index
    %c12 = arith.constant 12 : index
    %c0_25 = arith.constant 0 : index
    %c0_26 = arith.constant 0 : index
    %53 = vector.load %arg3[%c0_24, %c12, %c0_25, %c0_26] : memref<1x16x19x19xf32, #tpu.memory_space<vmem>>, vector<1x1x19x19xf32>
    %54 = vector.shape_cast %53 : vector<1x1x19x19xf32> to vector<19x19xf32>
    %55 = vector.shape_cast %52 : vector<19x19xf32> to vector<1x1x19x19xf32>
    tpu.vector_store %arg3[%c0_24, %c12, %c0_25, %c0_26], %55 {strides = array<i32>} : memref<1x16x19x19xf32, #tpu.memory_space<vmem>>, vector<1x1x19x19xf32>,
    %cst_27 = arith.constant 0.653281509 : f32
    %56 = vector.broadcast %cst_27 : f32 to vector<22x19xf32>
    %57 = arith.mulf %6, %56 : vector<22x19xf32>
    %cst_28 = arith.constant 0.270598054 : f32
    %58 = vector.broadcast %cst_28 : f32 to vector<22x19xf32>
    %59 = arith.mulf %10, %58 : vector<22x19xf32>
    %60 = arith.addf %57, %59 : vector<22x19xf32>
    %61 = vector.extract_strided_slice %60 {offsets = [0, 0], sizes = [19, 19], strides = [1, 1]} : vector<22x19xf32> to vector<19x19xf32>
    %62 = vector.extract_strided_slice %60 {offsets = [3, 0], sizes = [19, 19], strides = [1, 1]} : vector<22x19xf32> to vector<19x19xf32>
    %63 = arith.addf %61, %62 : vector<19x19xf32>
    %64 = arith.subf %61, %62 : vector<19x19xf32>
    %65 = vector.extract_strided_slice %60 {offsets = [1, 0], sizes = [19, 19], strides = [1, 1]} : vector<22x19xf32> to vector<19x19xf32>
    %66 = vector.extract_strided_slice %60 {offsets = [2, 0], sizes = [19, 19], strides = [1, 1]} : vector<22x19xf32> to vector<19x19xf32>
    %67 = arith.addf %65, %66 : vector<19x19xf32>
    %68 = arith.subf %65, %66 : vector<19x19xf32>
    %cst_29 = arith.constant 5.000000e-01 : f32
    %69 = vector.broadcast %cst_29 : f32 to vector<19x19xf32>
    %70 = arith.mulf %63, %69 : vector<19x19xf32>
    %cst_30 = arith.constant 5.000000e-01 : f32
    %71 = vector.broadcast %cst_30 : f32 to vector<19x19xf32>
    %72 = arith.mulf %67, %71 : vector<19x19xf32>
    %73 = arith.addf %70, %72 : vector<19x19xf32>
    %c0_31 = arith.constant 0 : index
    %c1_32 = arith.constant 1 : index
    %c0_33 = arith.constant 0 : index
    %c0_34 = arith.constant 0 : index
    %74 = vector.load %arg3[%c0_31, %c1_32, %c0_33, %c0_34] : memref<1x16x19x19xf32, #tpu.memory_space<vmem>>, vector<1x1x19x19xf32>
    %75 = vector.shape_cast %74 : vector<1x1x19x19xf32> to vector<19x19xf32>
    %76 = vector.shape_cast %73 : vector<19x19xf32> to vector<1x1x19x19xf32>
    tpu.vector_store %arg3[%c0_31, %c1_32, %c0_33, %c0_34], %76 {strides = array<i32>} : memref<1x16x19x19xf32, #tpu.memory_space<vmem>>, vector<1x1x19x19xf32>,
    %cst_35 = arith.constant 0.653281509 : f32
    %77 = vector.broadcast %cst_35 : f32 to vector<19x19xf32>
    %78 = arith.mulf %64, %77 : vector<19x19xf32>
    %cst_36 = arith.constant 0.270598054 : f32
    %79 = vector.broadcast %cst_36 : f32 to vector<19x19xf32>
    %80 = arith.mulf %68, %79 : vector<19x19xf32>
    %81 = arith.addf %78, %80 : vector<19x19xf32>
    %c0_37 = arith.constant 0 : index
    %c5 = arith.constant 5 : index
    %c0_38 = arith.constant 0 : index
    %c0_39 = arith.constant 0 : index
    %82 = vector.load %arg3[%c0_37, %c5, %c0_38, %c0_39] : memref<1x16x19x19xf32, #tpu.memory_space<vmem>>, vector<1x1x19x19xf32>
    %83 = vector.shape_cast %82 : vector<1x1x19x19xf32> to vector<19x19xf32>
    %84 = vector.shape_cast %81 : vector<19x19xf32> to vector<1x1x19x19xf32>
    tpu.vector_store %arg3[%c0_37, %c5, %c0_38, %c0_39], %84 {strides = array<i32>} : memref<1x16x19x19xf32, #tpu.memory_space<vmem>>, vector<1x1x19x19xf32>,
    %cst_40 = arith.constant 5.000000e-01 : f32
    %85 = vector.broadcast %cst_40 : f32 to vector<19x19xf32>
    %86 = arith.mulf %63, %85 : vector<19x19xf32>
    %cst_41 = arith.constant -5.000000e-01 : f32
    %87 = vector.broadcast %cst_41 : f32 to vector<19x19xf32>
    %88 = arith.mulf %67, %87 : vector<19x19xf32>
    %89 = arith.addf %86, %88 : vector<19x19xf32>
    %c0_42 = arith.constant 0 : index
    %c9 = arith.constant 9 : index
    %c0_43 = arith.constant 0 : index
    %c0_44 = arith.constant 0 : index
    %90 = vector.load %arg3[%c0_42, %c9, %c0_43, %c0_44] : memref<1x16x19x19xf32, #tpu.memory_space<vmem>>, vector<1x1x19x19xf32>
    %91 = vector.shape_cast %90 : vector<1x1x19x19xf32> to vector<19x19xf32>
    %92 = vector.shape_cast %89 : vector<19x19xf32> to vector<1x1x19x19xf32>
    tpu.vector_store %arg3[%c0_42, %c9, %c0_43, %c0_44], %92 {strides = array<i32>} : memref<1x16x19x19xf32, #tpu.memory_space<vmem>>, vector<1x1x19x19xf32>,
    %cst_45 = arith.constant 0.270598054 : f32
    %93 = vector.broadcast %cst_45 : f32 to vector<19x19xf32>
    %94 = arith.mulf %64, %93 : vector<19x19xf32>
    %cst_46 = arith.constant -0.653281509 : f32
    %95 = vector.broadcast %cst_46 : f32 to vector<19x19xf32>
    %96 = arith.mulf %68, %95 : vector<19x19xf32>
    %97 = arith.addf %94, %96 : vector<19x19xf32>
    %c0_47 = arith.constant 0 : index
    %c13 = arith.constant 13 : index
    %c0_48 = arith.constant 0 : index
    %c0_49 = arith.constant 0 : index
    %98 = vector.load %arg3[%c0_47, %c13, %c0_48, %c0_49] : memref<1x16x19x19xf32, #tpu.memory_space<vmem>>, vector<1x1x19x19xf32>
    %99 = vector.shape_cast %98 : vector<1x1x19x19xf32> to vector<19x19xf32>
    %100 = vector.shape_cast %97 : vector<19x19xf32> to vector<1x1x19x19xf32>
    tpu.vector_store %arg3[%c0_47, %c13, %c0_48, %c0_49], %100 {strides = array<i32>} : memref<1x16x19x19xf32, #tpu.memory_space<vmem>>, vector<1x1x19x19xf32>,
    %cst_50 = arith.constant 5.000000e-01 : f32
    %101 = vector.broadcast %cst_50 : f32 to vector<22x19xf32>
    %102 = arith.mulf %5, %101 : vector<22x19xf32>
    %cst_51 = arith.constant -5.000000e-01 : f32
    %103 = vector.broadcast %cst_51 : f32 to vector<22x19xf32>
    %104 = arith.mulf %9, %103 : vector<22x19xf32>
    %105 = arith.addf %102, %104 : vector<22x19xf32>
    %106 = vector.extract_strided_slice %105 {offsets = [0, 0], sizes = [19, 19], strides = [1, 1]} : vector<22x19xf32> to vector<19x19xf32>
    %107 = vector.extract_strided_slice %105 {offsets = [3, 0], sizes = [19, 19], strides = [1, 1]} : vector<22x19xf32> to vector<19x19xf32>
    %108 = arith.addf %106, %107 : vector<19x19xf32>
    %109 = arith.subf %106, %107 : vector<19x19xf32>
    %110 = vector.extract_strided_slice %105 {offsets = [1, 0], sizes = [19, 19], strides = [1, 1]} : vector<22x19xf32> to vector<19x19xf32>
    %111 = vector.extract_strided_slice %105 {offsets = [2, 0], sizes = [19, 19], strides = [1, 1]} : vector<22x19xf32> to vector<19x19xf32>
    %112 = arith.addf %110, %111 : vector<19x19xf32>
    %113 = arith.subf %110, %111 : vector<19x19xf32>
    %cst_52 = arith.constant 5.000000e-01 : f32
    %114 = vector.broadcast %cst_52 : f32 to vector<19x19xf32>
    %115 = arith.mulf %108, %114 : vector<19x19xf32>
    %cst_53 = arith.constant 5.000000e-01 : f32
    %116 = vector.broadcast %cst_53 : f32 to vector<19x19xf32>
    %117 = arith.mulf %112, %116 : vector<19x19xf32>
    %118 = arith.addf %115, %117 : vector<19x19xf32>
    %c0_54 = arith.constant 0 : index
    %c2_55 = arith.constant 2 : index
    %c0_56 = arith.constant 0 : index
    %c0_57 = arith.constant 0 : index
    %119 = vector.load %arg3[%c0_54, %c2_55, %c0_56, %c0_57] : memref<1x16x19x19xf32, #tpu.memory_space<vmem>>, vector<1x1x19x19xf32>
    %120 = vector.shape_cast %119 : vector<1x1x19x19xf32> to vector<19x19xf32>
    %121 = vector.shape_cast %118 : vector<19x19xf32> to vector<1x1x19x19xf32>
    tpu.vector_store %arg3[%c0_54, %c2_55, %c0_56, %c0_57], %121 {strides = array<i32>} : memref<1x16x19x19xf32, #tpu.memory_space<vmem>>, vector<1x1x19x19xf32>,
    %cst_58 = arith.constant 0.653281509 : f32
    %122 = vector.broadcast %cst_58 : f32 to vector<19x19xf32>
    %123 = arith.mulf %109, %122 : vector<19x19xf32>
    %cst_59 = arith.constant 0.270598054 : f32
    %124 = vector.broadcast %cst_59 : f32 to vector<19x19xf32>
    %125 = arith.mulf %113, %124 : vector<19x19xf32>
    %126 = arith.addf %123, %125 : vector<19x19xf32>
    %c0_60 = arith.constant 0 : index
    %c6 = arith.constant 6 : index
    %c0_61 = arith.constant 0 : index
    %c0_62 = arith.constant 0 : index
    %127 = vector.load %arg3[%c0_60, %c6, %c0_61, %c0_62] : memref<1x16x19x19xf32, #tpu.memory_space<vmem>>, vector<1x1x19x19xf32>
    %128 = vector.shape_cast %127 : vector<1x1x19x19xf32> to vector<19x19xf32>
    %129 = vector.shape_cast %126 : vector<19x19xf32> to vector<1x1x19x19xf32>
    tpu.vector_store %arg3[%c0_60, %c6, %c0_61, %c0_62], %129 {strides = array<i32>} : memref<1x16x19x19xf32, #tpu.memory_space<vmem>>, vector<1x1x19x19xf32>,
    %cst_63 = arith.constant 5.000000e-01 : f32
    %130 = vector.broadcast %cst_63 : f32 to vector<19x19xf32>
    %131 = arith.mulf %108, %130 : vector<19x19xf32>
    %cst_64 = arith.constant -5.000000e-01 : f32
    %132 = vector.broadcast %cst_64 : f32 to vector<19x19xf32>
    %133 = arith.mulf %112, %132 : vector<19x19xf32>
    %134 = arith.addf %131, %133 : vector<19x19xf32>
    %c0_65 = arith.constant 0 : index
    %c10 = arith.constant 10 : index
    %c0_66 = arith.constant 0 : index
    %c0_67 = arith.constant 0 : index
    %135 = vector.load %arg3[%c0_65, %c10, %c0_66, %c0_67] : memref<1x16x19x19xf32, #tpu.memory_space<vmem>>, vector<1x1x19x19xf32>
    %136 = vector.shape_cast %135 : vector<1x1x19x19xf32> to vector<19x19xf32>
    %137 = vector.shape_cast %134 : vector<19x19xf32> to vector<1x1x19x19xf32>
    tpu.vector_store %arg3[%c0_65, %c10, %c0_66, %c0_67], %137 {strides = array<i32>} : memref<1x16x19x19xf32, #tpu.memory_space<vmem>>, vector<1x1x19x19xf32>,
    %cst_68 = arith.constant 0.270598054 : f32
    %138 = vector.broadcast %cst_68 : f32 to vector<19x19xf32>
    %139 = arith.mulf %109, %138 : vector<19x19xf32>
    %cst_69 = arith.constant -0.653281509 : f32
    %140 = vector.broadcast %cst_69 : f32 to vector<19x19xf32>
    %141 = arith.mulf %113, %140 : vector<19x19xf32>
    %142 = arith.addf %139, %141 : vector<19x19xf32>
    %c0_70 = arith.constant 0 : index
    %c14 = arith.constant 14 : index
    %c0_71 = arith.constant 0 : index
    %c0_72 = arith.constant 0 : index
    %143 = vector.load %arg3[%c0_70, %c14, %c0_71, %c0_72] : memref<1x16x19x19xf32, #tpu.memory_space<vmem>>, vector<1x1x19x19xf32>
    %144 = vector.shape_cast %143 : vector<1x1x19x19xf32> to vector<19x19xf32>
    %145 = vector.shape_cast %142 : vector<19x19xf32> to vector<1x1x19x19xf32>
    tpu.vector_store %arg3[%c0_70, %c14, %c0_71, %c0_72], %145 {strides = array<i32>} : memref<1x16x19x19xf32, #tpu.memory_space<vmem>>, vector<1x1x19x19xf32>,
    %cst_73 = arith.constant 0.270598054 : f32
    %146 = vector.broadcast %cst_73 : f32 to vector<22x19xf32>
    %147 = arith.mulf %6, %146 : vector<22x19xf32>
    %cst_74 = arith.constant -0.653281509 : f32
    %148 = vector.broadcast %cst_74 : f32 to vector<22x19xf32>
    %149 = arith.mulf %10, %148 : vector<22x19xf32>
    %150 = arith.addf %147, %149 : vector<22x19xf32>
    %151 = vector.extract_strided_slice %150 {offsets = [0, 0], sizes = [19, 19], strides = [1, 1]} : vector<22x19xf32> to vector<19x19xf32>
    %152 = vector.extract_strided_slice %150 {offsets = [3, 0], sizes = [19, 19], strides = [1, 1]} : vector<22x19xf32> to vector<19x19xf32>
    %153 = arith.addf %151, %152 : vector<19x19xf32>
    %154 = arith.subf %151, %152 : vector<19x19xf32>
    %155 = vector.extract_strided_slice %150 {offsets = [1, 0], sizes = [19, 19], strides = [1, 1]} : vector<22x19xf32> to vector<19x19xf32>
    %156 = vector.extract_strided_slice %150 {offsets = [2, 0], sizes = [19, 19], strides = [1, 1]} : vector<22x19xf32> to vector<19x19xf32>
    %157 = arith.addf %155, %156 : vector<19x19xf32>
    %158 = arith.subf %155, %156 : vector<19x19xf32>
    %cst_75 = arith.constant 5.000000e-01 : f32
    %159 = vector.broadcast %cst_75 : f32 to vector<19x19xf32>
    %160 = arith.mulf %153, %159 : vector<19x19xf32>
    %cst_76 = arith.constant 5.000000e-01 : f32
    %161 = vector.broadcast %cst_76 : f32 to vector<19x19xf32>
    %162 = arith.mulf %157, %161 : vector<19x19xf32>
    %163 = arith.addf %160, %162 : vector<19x19xf32>
    %c0_77 = arith.constant 0 : index
    %c3_78 = arith.constant 3 : index
    %c0_79 = arith.constant 0 : index
    %c0_80 = arith.constant 0 : index
    %164 = vector.load %arg3[%c0_77, %c3_78, %c0_79, %c0_80] : memref<1x16x19x19xf32, #tpu.memory_space<vmem>>, vector<1x1x19x19xf32>
    %165 = vector.shape_cast %164 : vector<1x1x19x19xf32> to vector<19x19xf32>
    %166 = vector.shape_cast %163 : vector<19x19xf32> to vector<1x1x19x19xf32>
    tpu.vector_store %arg3[%c0_77, %c3_78, %c0_79, %c0_80], %166 {strides = array<i32>} : memref<1x16x19x19xf32, #tpu.memory_space<vmem>>, vector<1x1x19x19xf32>,
    %cst_81 = arith.constant 0.653281509 : f32
    %167 = vector.broadcast %cst_81 : f32 to vector<19x19xf32>
    %168 = arith.mulf %154, %167 : vector<19x19xf32>
    %cst_82 = arith.constant 0.270598054 : f32
    %169 = vector.broadcast %cst_82 : f32 to vector<19x19xf32>
    %170 = arith.mulf %158, %169 : vector<19x19xf32>
    %171 = arith.addf %168, %170 : vector<19x19xf32>
    %c0_83 = arith.constant 0 : index
    %c7 = arith.constant 7 : index
    %c0_84 = arith.constant 0 : index
    %c0_85 = arith.constant 0 : index
    %172 = vector.load %arg3[%c0_83, %c7, %c0_84, %c0_85] : memref<1x16x19x19xf32, #tpu.memory_space<vmem>>, vector<1x1x19x19xf32>
    %173 = vector.shape_cast %172 : vector<1x1x19x19xf32> to vector<19x19xf32>
    %174 = vector.shape_cast %171 : vector<19x19xf32> to vector<1x1x19x19xf32>
    tpu.vector_store %arg3[%c0_83, %c7, %c0_84, %c0_85], %174 {strides = array<i32>} : memref<1x16x19x19xf32, #tpu.memory_space<vmem>>, vector<1x1x19x19xf32>,
    %cst_86 = arith.constant 5.000000e-01 : f32
    %175 = vector.broadcast %cst_86 : f32 to vector<19x19xf32>
    %176 = arith.mulf %153, %175 : vector<19x19xf32>
    %cst_87 = arith.constant -5.000000e-01 : f32
    %177 = vector.broadcast %cst_87 : f32 to vector<19x19xf32>
    %178 = arith.mulf %157, %177 : vector<19x19xf32>
    %179 = arith.addf %176, %178 : vector<19x19xf32>
    %c0_88 = arith.constant 0 : index
    %c11 = arith.constant 11 : index
    %c0_89 = arith.constant 0 : index
    %c0_90 = arith.constant 0 : index
    %180 = vector.load %arg3[%c0_88, %c11, %c0_89, %c0_90] : memref<1x16x19x19xf32, #tpu.memory_space<vmem>>, vector<1x1x19x19xf32>
    %181 = vector.shape_cast %180 : vector<1x1x19x19xf32> to vector<19x19xf32>
    %182 = vector.shape_cast %179 : vector<19x19xf32> to vector<1x1x19x19xf32>
    tpu.vector_store %arg3[%c0_88, %c11, %c0_89, %c0_90], %182 {strides = array<i32>} : memref<1x16x19x19xf32, #tpu.memory_space<vmem>>, vector<1x1x19x19xf32>,
    %cst_91 = arith.constant 0.270598054 : f32
    %183 = vector.broadcast %cst_91 : f32 to vector<19x19xf32>
    %184 = arith.mulf %154, %183 : vector<19x19xf32>
    %cst_92 = arith.constant -0.653281509 : f32
    %185 = vector.broadcast %cst_92 : f32 to vector<19x19xf32>
    %186 = arith.mulf %158, %185 : vector<19x19xf32>
    %187 = arith.addf %184, %186 : vector<19x19xf32>
    %c0_93 = arith.constant 0 : index
    %c15 = arith.constant 15 : index
    %c0_94 = arith.constant 0 : index
    %c0_95 = arith.constant 0 : index
    %188 = vector.load %arg3[%c0_93, %c15, %c0_94, %c0_95] : memref<1x16x19x19xf32, #tpu.memory_space<vmem>>, vector<1x1x19x19xf32>
    %189 = vector.shape_cast %188 : vector<1x1x19x19xf32> to vector<19x19xf32>
    %190 = vector.shape_cast %187 : vector<19x19xf32> to vector<1x1x19x19xf32>
    tpu.vector_store %arg3[%c0_93, %c15, %c0_94, %c0_95], %190 {strides = array<i32>} : memref<1x16x19x19xf32, #tpu.memory_space<vmem>>, vector<1x1x19x19xf32>,
    return
  }
  func.func @transform_0(%arg0: i32, %arg1: i32) -> (i32, i32, i32) {
    %c0_i32 = arith.constant 0 : i32
    %c0_i32_0 = arith.constant 0 : i32
    %c0_i32_1 = arith.constant 0 : i32
    return %arg0, %c0_i32, %c0_i32_0 : i32, i32, i32
  }
  func.func @transform_1(%arg0: i32, %arg1: i32) -> (i32, i32, i32, i32) {
    %c0_i32 = arith.constant 0 : i32
    %c0_i32_0 = arith.constant 0 : i32
    %c0_i32_1 = arith.constant 0 : i32
    return %arg0, %c0_i32, %arg1, %c0_i32_0 : i32, i32, i32, i32
  }
}

</mosaic_0001>

<llo_original>
// kernel: tpu_custom_call.1
$region0: #{tpu_custom_call.1}
  #allocation0 [shape = 'u32[]', space=smem, size = 0x4, offset = 0x4, fixed_abs, tag = 'smem constant byte address 0x4 - core index']
  #allocation1 [shape = 'u32[72,128]{1,0:T(1,128)}', space=vmem, size = 0x9000, scoped, tag = 'internal scratch']
  #allocation2 [shape = 'f32[22,22]{1,0:T(8,128)}', space=vmem, size = 0x3000, scoped, tag = 'scratch operand']
  %s0 = inlined_call_operand.hbm [shape: f32[2,16,16], index: 0, kind: input, shape index: {}]
  %s1 = inlined_call_operand.vmem [shape: f32[2,16,19,19], index: 1, kind: output, shape index: {}]
  %s2 = sld [smem:[#allocation0]]
  $region45: #{tpu_custom_call.1} parent=0
    _
  %s4 = ssub.s32 1, %s2
  %s5 = scalar_select 0, %s4, %s2
  $region1: #{tpu_custom_call.1} parent=0
    #allocation3 [shape = 'u8[8192]{0}', space=vmem, size = 0x2000, scoped, tag = 'input window, operand 0, single buffered']
    #allocation4 [shape = 's32[2]{0}', space=sflag, size = 0x8, scoped, tag = 'scoped memory for tpu_custom_call.1']
    %6 = vsyncpa [#allocation4], 0
    loop: start=0, step=1, limit=4
    $region2: #{tpu_custom_call.1} parent=1 // loop_pre_header
      _
    $region3: #{tpu_custom_call.1} parent=1 // loop_header
      %s8 = sphi 0, %s12
      %p9 = scmp.ge.s32.totalorder %s8, 4
      %s15 = sphi 0, %s27
      %s16 = sphi 0, %s23
      %s17 = sphi 0, %s15
      %s18 = sphi 0, %s16
      %s19 = sphi 0, %s17
      %s20 = sphi 0, %s18
      %s30 = sphi 0, %s32
      %s33 = sphi 0, %s30
      %s34 = sphi 0, %s33
      %s50 = sphi 0, %s34
      %s58 = sphi 0, %s60
      %s61 = sphi 0, %s58
      %s62 = sphi 0, %s61
      %s78 = sphi 0, %s62
    $region4: #{tpu_custom_call.1} parent=1 // loop_header_branch
      %11 = sbr.rel (%p9) target = $region8
    $region5: #{tpu_custom_call.1} parent=1 // loop_body
      %s13 = ssub.s32 %s8, 1
      %s14 = ssub.s32 %s8, 2
      %s21 = sadd.s32 1, %s16
      %p22 = scmp.ge.s32.totalorder %s21, 1
      %s23 = scalar_select %p22, 0, %s21
      %s24 = sadd.s32 1, %s15
      %s25 = scalar_select %p22, %s24, %s15
      %p26 = scmp.ge.s32.totalorder %s25, 2
      %s27 = scalar_select %p26, 0, %s25
      %s28 = ssub.s32 %s15, %s27
      %p29 = scmp.eq.s32.totalorder %s28, 0
      %s31 = sadd.s32 %s30, 1
      %s32 = scalar_select %p29, %s30, %s31
      %p35 = pneg %p29
      %p36 = scmp.eq.s32.totalorder %s8, 1
      %p37 = por %p35, %p36
      %p38 = scmp.ne.s32.totalorder %s30, %s33
      %p39 = scmp.eq.s32.totalorder %s8, 0
      %p40 = por %p38, %p39
      %p41 = scmp.ne.s32.totalorder %s30, %s33
      %p42 = scmp.eq.s32.totalorder %s13, 1
      %p43 = por %p41, %p42
      %p44 = scmp.ne.s32.totalorder %s33, %s34
      %p45 = scmp.eq.s32.totalorder %s13, 0
      %p46 = por %p44, %p45
      %p47 = scmp.ne.s32.totalorder %s33, %s34
      %p48 = scmp.eq.s32.totalorder %s14, 1
      %p49 = por %p47, %p48
      %p51 = scmp.ne.s32.totalorder %s34, %s50
      %p52 = scmp.eq.s32.totalorder %s14, 0
      %p53 = por %p51, %p52
      %s54 = ssub.s32 %s15, %s27
      %s55 = ssub.s32 %s16, %s23
      %s56 = sor.u32 %s54, %s55
      %p57 = scmp.eq.s32.totalorder %s56, 0
      %s59 = sadd.s32 %s58, 1
      %s60 = scalar_select %p57, %s58, %s59
      %p63 = pneg %p57
      %p64 = scmp.eq.s32.totalorder %s8, 1
      %p65 = por %p63, %p64
      %p66 = scmp.ne.s32.totalorder %s58, %s61
      %p67 = scmp.eq.s32.totalorder %s8, 0
      %p68 = por %p66, %p67
      %p69 = scmp.ne.s32.totalorder %s58, %s61
      %p70 = scmp.eq.s32.totalorder %s13, 1
      %p71 = por %p69, %p70
      %p72 = scmp.ne.s32.totalorder %s61, %s62
      %p73 = scmp.eq.s32.totalorder %s13, 0
      %p74 = por %p72, %p73
      %p75 = scmp.ne.s32.totalorder %s61, %s62
      %p76 = scmp.eq.s32.totalorder %s14, 1
      %p77 = por %p75, %p76
      %p79 = scmp.ne.s32.totalorder %s62, %s78
      %p80 = scmp.eq.s32.totalorder %s14, 0
      %p81 = por %p79, %p80
      %p82 = scmp.le.s32.totalorder 1, %s8
      %p83 = scmp.lt.s32.totalorder %s8, 3
      %p84 = pnand %p82, %p83
      %p85 = pneg %p84
      // Predicated region
      $region9: #{tpu_custom_call.1} parent=5 // pred_check
        _
      $region10: #{tpu_custom_call.1} parent=5 // pred_check_branch
        %87 = sbr.rel (%p84) target = $region12
      $region11: #{tpu_custom_call.1} parent=5 // pred_region
        %s88 = ssub.s32 %s8, 1
        // Predicated region
        $region13: #{tpu_custom_call.1} parent=11 // pred_check
          %p89 = pneg %p46
        $region14: #{tpu_custom_call.1} parent=11 // pred_check_branch
          %91 = sbr.rel (%p89) target = $region16
        $region15: #{tpu_custom_call.1} parent=11 // pred_region
          %93 = vsyncadd [#allocation4], 0
          %s94 = smul.addr %s17, 2
          %s95 = smul.addr %s94, 8
          %s96 = scalar_lea.hbm %s0, %s95
          %s97 = sshll.u32 %s96, 4
          %s98 = int_to_ptr.hbm [resolvable:$true] %s97
          %s99 = sshll.u32 [#allocation3], 4
          %s100 = int_to_ptr.vmem [resolvable:$true] %s99
          %105 = dma.hbm_to_vmem [thread:$0]  %s98, 256, %s100, [#allocation4], 128, 128, 8
        $region16: #{tpu_custom_call.1} parent=11 // pred_fallthru
          _
      $region12: #{tpu_custom_call.1} parent=5 // pred_fallthru
        _
      %p106 = scmp.lt.s32.totalorder %s8, 2
      // Predicated region
      $region17: #{tpu_custom_call.1} parent=5 // pred_check
        %p107 = pneg %p106
      $region18: #{tpu_custom_call.1} parent=5 // pred_check_branch
        %109 = sbr.rel (%p107) target = $region20
      $region19: #{tpu_custom_call.1} parent=5 // pred_region
        _
      $region20: #{tpu_custom_call.1} parent=5 // pred_fallthru
        _
      %p110 = scmp.le.s32.totalorder 1, %s8
      %p111 = scmp.lt.s32.totalorder %s8, 3
      %p112 = pnand %p110, %p111
      %p113 = pneg %p112
      // Predicated region
      $region21: #{tpu_custom_call.1} parent=5 // pred_check
        _
      $region22: #{tpu_custom_call.1} parent=5 // pred_check_branch
        %115 = sbr.rel (%p112) target = $region24
      $region23: #{tpu_custom_call.1} parent=5 // pred_region
        %s116 = ssub.s32 %s8, 1
        // Predicated region
        $region25: #{tpu_custom_call.1} parent=23 // pred_check
          %p117 = pneg %p46
        $region26: #{tpu_custom_call.1} parent=23 // pred_check_branch
          %119 = sbr.rel (%p117) target = $region28
        $region27: #{tpu_custom_call.1} parent=23 // pred_region
          %121 = dma.done [#allocation4], 256
        $region28: #{tpu_custom_call.1} parent=23 // pred_fallthru
          _
        %p122 = pneg %p46
        %p123 = pneg %p43
        %p124 = pneg %p74
        %p125 = pneg %p71
        %s126 = smul.u32 3, %s18
        %p127 = scmp.lt.s32.totalorder %s17, 1
        %s128 = scalar_select %p127, %s17, 1
        %p129 = scmp.lt.s32.totalorder %s126, 2
        %s130 = scalar_select %p129, %s126, 2
        %s131 = smul.addr %s128, 48
        %s132 = sadd.s32 %s130, %s131
        %s133 = smul.addr %s132, 8
        %s134 = scalar_lea.vmem %s1, %s133
        %s135 = smul.u32 3, %s18
        %p136 = scmp.lt.s32.totalorder %s17, 1
        %s137 = scalar_select %p136, %s17, 1
        %p138 = scmp.lt.s32.totalorder %s135, 2
        %s139 = scalar_select %p138, %s135, 2
        %s140 = smul.addr %s137, 48
        %s141 = sadd.s32 %s139, %s140
        %s142 = smul.addr %s141, 8
        %s143 = scalar_lea.vmem %s1, %s142
        %s144 = smul.u32 3, %s18
        %p145 = scmp.eq.s32.totalorder %s18, 0
        // Predicated region
        $region29: #{tpu_custom_call.1} parent=23 // pred_check
          %p146 = pneg %p145
        $region30: #{tpu_custom_call.1} parent=23 // pred_check_branch
          %148 = sbr.rel (%p146) target = $region32
        $region31: #{tpu_custom_call.1} parent=23 // pred_region
          %vm149 = vcmask 179200
          %150 = vst.msk [vmem:[#allocation2] sm:$0xff] %vm149, 0.0
          %151 = vst.msk [vmem:[#allocation2 + $0x8] sm:$0xff] %vm149, 0.0
          %vm152 = vcmask 177152
          %153 = vst.msk [vmem:[#allocation2 + $0x10] sm:$0x3f] %vm152, 0.0
          %v154 = vld [vmem:[#allocation3] sm:$0xff]
          %v155 = vld [vmem:[#allocation3 + $0x8] sm:$0xff]
          %158 = vrot.lane.b32.xlu0 %v154, 3
          %v159 = vpop.permute.xlu0 %158
          %160 = vrot.lane.b32.xlu0 %v155, 3
          %v161 = vpop.permute.xlu0 %160
          %vm164 = vcmask 154648
          %165 = vst.msk [vmem:[#allocation2 + $0x3] sm:$0xff] %vm164, %v159
          %166 = vst.msk [vmem:[#allocation2 + $0xb] sm:$0xff] %vm164, %v161
        $region32: #{tpu_custom_call.1} parent=23 // pred_fallthru
          _
        %v167 = vld [vmem:[#allocation2] sm:$0xff]
        %v168 = vld [vmem:[#allocation2 + $0x8] sm:$0xff]
        %v169 = vld [vmem:[#allocation2 + $0x10] sm:$0x3f]
        %173 = vrot.lane.b32.xlu0 %v167, 125
        %v174 = vpop.permute.xlu0 %173
        %175 = vrot.lane.b32.xlu0 %v168, 125
        %v176 = vpop.permute.xlu0 %175
        %177 = vrot.lane.b32.xlu0 %v169, 125
        %v178 = vpop.permute.xlu0 %177
        %v182 = vadd.f32 %v167, %v174
        %v183 = vadd.f32 %v168, %v176
        %v184 = vadd.f32 %v169, %v178
        %v185 = vsub.f32 %v167, %v174
        %v186 = vsub.f32 %v168, %v176
        %v187 = vsub.f32 %v169, %v178
        %188 = vrot.lane.b32.xlu0 %v167, 127
        %v189 = vpop.permute.xlu0 %188
        %190 = vrot.lane.b32.xlu0 %v168, 127
        %v191 = vpop.permute.xlu0 %190
        %192 = vrot.lane.b32.xlu0 %v169, 127
        %v193 = vpop.permute.xlu0 %192
        %v197 = vadd.f32 %v167, %v189
        %v198 = vadd.f32 %v168, %v191
        %v199 = vadd.f32 %v169, %v193
        %v200 = vsub.f32 %v167, %v189
        %v201 = vsub.f32 %v168, %v191
        %v202 = vsub.f32 %v169, %v193
        %v203 = vmul.f32 %v182, 0.5
        %v204 = vmul.f32 %v183, 0.5
        %v205 = vmul.f32 %v184, 0.5
        %v206 = vmul.f32 %v197, 0.5
        %v207 = vmul.f32 %v198, 0.5
        %v208 = vmul.f32 %v199, 0.5
        %212 = vrot.lane.b32.xlu0 %v206, 127
        %v213 = vpop.permute.xlu0 %212
        %214 = vrot.lane.b32.xlu0 %v207, 127
        %v215 = vpop.permute.xlu0 %214
        %216 = vrot.lane.b32.xlu0 %v208, 127
        %v217 = vpop.permute.xlu0 %216
        %v221 = vadd.f32 %v203, %v213
        %v222 = vadd.f32 %v204, %v215
        %v223 = vadd.f32 %v205, %v217
        %vm227 = vcmask 1044480
        %v228 = vrot.slane %v221, 3
        %v229 = vrot.slane %v222, 3
        %v230 = vsel %vm227, %v228, %v229
        %v231 = vrot.slane %v223, 3
        %v232 = vsel %vm227, %v229, %v231
        %v236 = vadd.f32 %v221, %v230
        %v237 = vadd.f32 %v222, %v232
        %v238 = vadd.f32 %v223, %v231
        %v239 = vsub.f32 %v221, %v230
        %v240 = vsub.f32 %v222, %v232
        %v241 = vsub.f32 %v223, %v231
        %vm242 = vcmask 1046528
        %v243 = vrot.slane %v221, 1
        %v244 = vrot.slane %v222, 1
        %v245 = vsel %vm242, %v243, %v244
        %v246 = vrot.slane %v223, 1
        %v247 = vsel %vm242, %v244, %v246
        %v251 = vadd.f32 %v221, %v245
        %v252 = vadd.f32 %v222, %v247
        %v253 = vadd.f32 %v223, %v246
        %v254 = vsub.f32 %v221, %v245
        %v255 = vsub.f32 %v222, %v247
        %v256 = vsub.f32 %v223, %v246
        %v257 = vmul.f32 %v236, 0.5
        %v258 = vmul.f32 %v237, 0.5
        %v259 = vmul.f32 %v238, 0.5
        %v260 = vmul.f32 %v251, 0.5
        %v261 = vmul.f32 %v252, 0.5
        %v262 = vmul.f32 %v253, 0.5
        %v266 = vrot.slane %v260, 1
        %v267 = vrot.slane %v261, 1
        %v268 = vsel %vm242, %v266, %v267
        %v269 = vrot.slane %v262, 1
        %v270 = vsel %vm242, %v267, %v269
        %v274 = vadd.f32 %v257, %v268
        %v275 = vadd.f32 %v258, %v270
        %v276 = vadd.f32 %v259, %v269
        %vm277 = vcmask 154624
        %278 = vst.msk [vmem:[%s143] sm:$0xff] %vm277, %v274
        %279 = vst.msk [vmem:[%s143 + $0x8] sm:$0xff] %vm277, %v275
        %vm280 = vcmask 149504
        %281 = vst.msk [vmem:[%s143 + $0x10] sm:$0x7] %vm280, %v276
        %v282 = vmul.f32 %v239, 0.6532815
        %v283 = vmul.f32 %v240, 0.6532815
        %v284 = vmul.f32 %v241, 0.6532815
        %v285 = vmul.f32 %v254, 0.27059805
        %v286 = vmul.f32 %v255, 0.27059805
        %v287 = vmul.f32 %v256, 0.27059805
        %v291 = vrot.slane %v285, 1
        %v292 = vrot.slane %v286, 1
        %v293 = vsel %vm242, %v291, %v292
        %v294 = vrot.slane %v287, 1
        %v295 = vsel %vm242, %v292, %v294
        %v299 = vadd.f32 %v282, %v293
        %v300 = vadd.f32 %v283, %v295
        %v301 = vadd.f32 %v284, %v294
        %s302 = scalar_lea.vmem %s143, 96
        %303 = vst.msk [vmem:[%s302] sm:$0xff] %vm277, %v299
        %304 = vst.msk [vmem:[%s302 + $0x8] sm:$0xff] %vm277, %v300
        %305 = vst.msk [vmem:[%s302 + $0x10] sm:$0x7] %vm280, %v301
        %v306 = vmul.f32 %v251, -0.5
        %v307 = vmul.f32 %v252, -0.5
        %v308 = vmul.f32 %v253, -0.5
        %v312 = vrot.slane %v306, 1
        %v313 = vrot.slane %v307, 1
        %v314 = vsel %vm242, %v312, %v313
        %v315 = vrot.slane %v308, 1
        %v316 = vsel %vm242, %v313, %v315
        %v320 = vadd.f32 %v257, %v314
        %v321 = vadd.f32 %v258, %v316
        %v322 = vadd.f32 %v259, %v315
        %s323 = scalar_lea.vmem %s143, 192
        %324 = vst.msk [vmem:[%s323] sm:$0xff] %vm277, %v320
        %325 = vst.msk [vmem:[%s323 + $0x8] sm:$0xff] %vm277, %v321
        %326 = vst.msk [vmem:[%s323 + $0x10] sm:$0x7] %vm280, %v322
        %v327 = vmul.f32 %v239, 0.27059805
        %v328 = vmul.f32 %v240, 0.27059805
        %v329 = vmul.f32 %v241, 0.27059805
        %v330 = vmul.f32 %v254, -0.6532815
        %v331 = vmul.f32 %v255, -0.6532815
        %v332 = vmul.f32 %v256, -0.6532815
        %v336 = vrot.slane %v330, 1
        %v337 = vrot.slane %v331, 1
        %v338 = vsel %vm242, %v336, %v337
        %v339 = vrot.slane %v332, 1
        %v340 = vsel %vm242, %v337, %v339
        %v344 = vadd.f32 %v327, %v338
        %v345 = vadd.f32 %v328, %v340
        %v346 = vadd.f32 %v329, %v339
        %s347 = scalar_lea.vmem %s143, 288
        %348 = vst.msk [vmem:[%s347] sm:$0xff] %vm277, %v344
        %349 = vst.msk [vmem:[%s347 + $0x8] sm:$0xff] %vm277, %v345
        %350 = vst.msk [vmem:[%s347 + $0x10] sm:$0x7] %vm280, %v346
        %v351 = vmul.f32 %v185, 0.6532815
        %v352 = vmul.f32 %v186, 0.6532815
        %v353 = vmul.f32 %v187, 0.6532815
        %v354 = vmul.f32 %v200, 0.27059805
        %v355 = vmul.f32 %v201, 0.27059805
        %v356 = vmul.f32 %v202, 0.27059805
        %360 = vrot.lane.b32.xlu0 %v354, 127
        %v361 = vpop.permute.xlu0 %360
        %362 = vrot.lane.b32.xlu0 %v355, 127
        %v363 = vpop.permute.xlu0 %362
        %364 = vrot.lane.b32.xlu0 %v356, 127
        %v365 = vpop.permute.xlu0 %364
        %v369 = vadd.f32 %v351, %v361
        %v370 = vadd.f32 %v352, %v363
        %v371 = vadd.f32 %v353, %v365
        %v375 = vrot.slane %v369, 3
        %v376 = vrot.slane %v370, 3
        %v377 = vsel %vm227, %v375, %v376
        %v378 = vrot.slane %v371, 3
        %v379 = vsel %vm227, %v376, %v378
        %v383 = vadd.f32 %v369, %v377
        %v384 = vadd.f32 %v370, %v379
        %v385 = vadd.f32 %v371, %v378
        %v386 = vsub.f32 %v369, %v377
        %v387 = vsub.f32 %v370, %v379
        %v388 = vsub.f32 %v371, %v378
        %v389 = vrot.slane %v369, 1
        %v390 = vrot.slane %v370, 1
        %v391 = vsel %vm242, %v389, %v390
        %v392 = vrot.slane %v371, 1
        %v393 = vsel %vm242, %v390, %v392
        %v397 = vadd.f32 %v369, %v391
        %v398 = vadd.f32 %v370, %v393
        %v399 = vadd.f32 %v371, %v392
        %v400 = vsub.f32 %v369, %v391
        %v401 = vsub.f32 %v370, %v393
        %v402 = vsub.f32 %v371, %v392
        %v403 = vmul.f32 %v383, 0.5
        %v404 = vmul.f32 %v384, 0.5
        %v405 = vmul.f32 %v385, 0.5
        %v406 = vmul.f32 %v397, 0.5
        %v407 = vmul.f32 %v398, 0.5
        %v408 = vmul.f32 %v399, 0.5
        %v412 = vrot.slane %v406, 1
        %v413 = vrot.slane %v407, 1
        %v414 = vsel %vm242, %v412, %v413
        %v415 = vrot.slane %v408, 1
        %v416 = vsel %vm242, %v413, %v415
        %v420 = vadd.f32 %v403, %v414
        %v421 = vadd.f32 %v404, %v416
        %v422 = vadd.f32 %v405, %v415
        %s423 = scalar_lea.vmem %s143, 24
        %424 = vst.msk [vmem:[%s423] sm:$0xff] %vm277, %v420
        %425 = vst.msk [vmem:[%s423 + $0x8] sm:$0xff] %vm277, %v421
        %426 = vst.msk [vmem:[%s423 + $0x10] sm:$0x7] %vm280, %v422
        %v427 = vmul.f32 %v386, 0.6532815
        %v428 = vmul.f32 %v387, 0.6532815
        %v429 = vmul.f32 %v388, 0.6532815
        %v430 = vmul.f32 %v400, 0.27059805
        %v431 = vmul.f32 %v401, 0.27059805
        %v432 = vmul.f32 %v402, 0.27059805
        %v436 = vrot.slane %v430, 1
        %v437 = vrot.slane %v431, 1
        %v438 = vsel %vm242, %v436, %v437
        %v439 = vrot.slane %v432, 1
        %v440 = vsel %vm242, %v437, %v439
        %v444 = vadd.f32 %v427, %v438
        %v445 = vadd.f32 %v428, %v440
        %v446 = vadd.f32 %v429, %v439
        %s447 = scalar_lea.vmem %s143, 120
        %448 = vst.msk [vmem:[%s447] sm:$0xff] %vm277, %v444
        %449 = vst.msk [vmem:[%s447 + $0x8] sm:$0xff] %vm277, %v445
        %450 = vst.msk [vmem:[%s447 + $0x10] sm:$0x7] %vm280, %v446
        %v451 = vmul.f32 %v397, -0.5
        %v452 = vmul.f32 %v398, -0.5
        %v453 = vmul.f32 %v399, -0.5
        %v457 = vrot.slane %v451, 1
        %v458 = vrot.slane %v452, 1
        %v459 = vsel %vm242, %v457, %v458
        %v460 = vrot.slane %v453, 1
        %v461 = vsel %vm242, %v458, %v460
        %v465 = vadd.f32 %v403, %v459
        %v466 = vadd.f32 %v404, %v461
        %v467 = vadd.f32 %v405, %v460
        %s468 = scalar_lea.vmem %s143, 216
        %469 = vst.msk [vmem:[%s468] sm:$0xff] %vm277, %v465
        %470 = vst.msk [vmem:[%s468 + $0x8] sm:$0xff] %vm277, %v466
        %471 = vst.msk [vmem:[%s468 + $0x10] sm:$0x7] %vm280, %v467
        %v472 = vmul.f32 %v386, 0.27059805
        %v473 = vmul.f32 %v387, 0.27059805
        %v474 = vmul.f32 %v388, 0.27059805
        %v475 = vmul.f32 %v400, -0.6532815
        %v476 = vmul.f32 %v401, -0.6532815
        %v477 = vmul.f32 %v402, -0.6532815
        %v481 = vrot.slane %v475, 1
        %v482 = vrot.slane %v476, 1
        %v483 = vsel %vm242, %v481, %v482
        %v484 = vrot.slane %v477, 1
        %v485 = vsel %vm242, %v482, %v484
        %v489 = vadd.f32 %v472, %v483
        %v490 = vadd.f32 %v473, %v485
        %v491 = vadd.f32 %v474, %v484
        %s492 = scalar_lea.vmem %s143, 312
        %493 = vst.msk [vmem:[%s492] sm:$0xff] %vm277, %v489
        %494 = vst.msk [vmem:[%s492 + $0x8] sm:$0xff] %vm277, %v490
        %495 = vst.msk [vmem:[%s492 + $0x10] sm:$0x7] %vm280, %v491
        %v496 = vmul.f32 %v197, -0.5
        %v497 = vmul.f32 %v198, -0.5
        %v498 = vmul.f32 %v199, -0.5
        %502 = vrot.lane.b32.xlu0 %v496, 127
        %v503 = vpop.permute.xlu0 %502
        %504 = vrot.lane.b32.xlu0 %v497, 127
        %v505 = vpop.permute.xlu0 %504
        %506 = vrot.lane.b32.xlu0 %v498, 127
        %v507 = vpop.permute.xlu0 %506
        %v511 = vadd.f32 %v203, %v503
        %v512 = vadd.f32 %v204, %v505
        %v513 = vadd.f32 %v205, %v507
        %v517 = vrot.slane %v511, 3
        %v518 = vrot.slane %v512, 3
        %v519 = vsel %vm227, %v517, %v518
        %v520 = vrot.slane %v513, 3
        %v521 = vsel %vm227, %v518, %v520
        %v525 = vadd.f32 %v511, %v519
        %v526 = vadd.f32 %v512, %v521
        %v527 = vadd.f32 %v513, %v520
        %v528 = vsub.f32 %v511, %v519
        %v529 = vsub.f32 %v512, %v521
        %v530 = vsub.f32 %v513, %v520
        %v531 = vrot.slane %v511, 1
        %v532 = vrot.slane %v512, 1
        %v533 = vsel %vm242, %v531, %v532
        %v534 = vrot.slane %v513, 1
        %v535 = vsel %vm242, %v532, %v534
        %v539 = vadd.f32 %v511, %v533
        %v540 = vadd.f32 %v512, %v535
        %v541 = vadd.f32 %v513, %v534
        %v542 = vsub.f32 %v511, %v533
        %v543 = vsub.f32 %v512, %v535
        %v544 = vsub.f32 %v513, %v534
        %v545 = vmul.f32 %v525, 0.5
        %v546 = vmul.f32 %v526, 0.5
        %v547 = vmul.f32 %v527, 0.5
        %v548 = vmul.f32 %v539, 0.5
        %v549 = vmul.f32 %v540, 0.5
        %v550 = vmul.f32 %v541, 0.5
        %v554 = vrot.slane %v548, 1
        %v555 = vrot.slane %v549, 1
        %v556 = vsel %vm242, %v554, %v555
        %v557 = vrot.slane %v550, 1
        %v558 = vsel %vm242, %v555, %v557
        %v562 = vadd.f32 %v545, %v556
        %v563 = vadd.f32 %v546, %v558
        %v564 = vadd.f32 %v547, %v557
        %s565 = scalar_lea.vmem %s143, 48
        %566 = vst.msk [vmem:[%s565] sm:$0xff] %vm277, %v562
        %567 = vst.msk [vmem:[%s565 + $0x8] sm:$0xff] %vm277, %v563
        %568 = vst.msk [vmem:[%s565 + $0x10] sm:$0x7] %vm280, %v564
        %v569 = vmul.f32 %v528, 0.6532815
        %v570 = vmul.f32 %v529, 0.6532815
        %v571 = vmul.f32 %v530, 0.6532815
        %v572 = vmul.f32 %v542, 0.27059805
        %v573 = vmul.f32 %v543, 0.27059805
        %v574 = vmul.f32 %v544, 0.27059805
        %v578 = vrot.slane %v572, 1
        %v579 = vrot.slane %v573, 1
        %v580 = vsel %vm242, %v578, %v579
        %v581 = vrot.slane %v574, 1
        %v582 = vsel %vm242, %v579, %v581
        %v586 = vadd.f32 %v569, %v580
        %v587 = vadd.f32 %v570, %v582
        %v588 = vadd.f32 %v571, %v581
        %s589 = scalar_lea.vmem %s143, 144
        %590 = vst.msk [vmem:[%s589] sm:$0xff] %vm277, %v586
        %591 = vst.msk [vmem:[%s589 + $0x8] sm:$0xff] %vm277, %v587
        %592 = vst.msk [vmem:[%s589 + $0x10] sm:$0x7] %vm280, %v588
        %v593 = vmul.f32 %v539, -0.5
        %v594 = vmul.f32 %v540, -0.5
        %v595 = vmul.f32 %v541, -0.5
        %v599 = vrot.slane %v593, 1
        %v600 = vrot.slane %v594, 1
        %v601 = vsel %vm242, %v599, %v600
        %v602 = vrot.slane %v595, 1
        %v603 = vsel %vm242, %v600, %v602
        %v607 = vadd.f32 %v545, %v601
        %v608 = vadd.f32 %v546, %v603
        %v609 = vadd.f32 %v547, %v602
        %s610 = scalar_lea.vmem %s143, 240
        %611 = vst.msk [vmem:[%s610] sm:$0xff] %vm277, %v607
        %612 = vst.msk [vmem:[%s610 + $0x8] sm:$0xff] %vm277, %v608
        %613 = vst.msk [vmem:[%s610 + $0x10] sm:$0x7] %vm280, %v609
        %v614 = vmul.f32 %v528, 0.27059805
        %v615 = vmul.f32 %v529, 0.27059805
        %v616 = vmul.f32 %v530, 0.27059805
        %v617 = vmul.f32 %v542, -0.6532815
        %v618 = vmul.f32 %v543, -0.6532815
        %v619 = vmul.f32 %v544, -0.6532815
        %v623 = vrot.slane %v617, 1
        %v624 = vrot.slane %v618, 1
        %v625 = vsel %vm242, %v623, %v624
        %v626 = vrot.slane %v619, 1
        %v627 = vsel %vm242, %v624, %v626
        %v631 = vadd.f32 %v614, %v625
        %v632 = vadd.f32 %v615, %v627
        %v633 = vadd.f32 %v616, %v626
        %s634 = scalar_lea.vmem %s143, 336
        %635 = vst.msk [vmem:[%s634] sm:$0xff] %vm277, %v631
        %636 = vst.msk [vmem:[%s634 + $0x8] sm:$0xff] %vm277, %v632
        %637 = vst.msk [vmem:[%s634 + $0x10] sm:$0x7] %vm280, %v633
        %v638 = vmul.f32 %v185, 0.27059805
        %v639 = vmul.f32 %v186, 0.27059805
        %v640 = vmul.f32 %v187, 0.27059805
        %v641 = vmul.f32 %v200, -0.6532815
        %v642 = vmul.f32 %v201, -0.6532815
        %v643 = vmul.f32 %v202, -0.6532815
        %647 = vrot.lane.b32.xlu0 %v641, 127
        %v648 = vpop.permute.xlu0 %647
        %649 = vrot.lane.b32.xlu0 %v642, 127
        %v650 = vpop.permute.xlu0 %649
        %651 = vrot.lane.b32.xlu0 %v643, 127
        %v652 = vpop.permute.xlu0 %651
        %v656 = vadd.f32 %v638, %v648
        %v657 = vadd.f32 %v639, %v650
        %v658 = vadd.f32 %v640, %v652
        %v662 = vrot.slane %v656, 3
        %v663 = vrot.slane %v657, 3
        %v664 = vsel %vm227, %v662, %v663
        %v665 = vrot.slane %v658, 3
        %v666 = vsel %vm227, %v663, %v665
        %v670 = vadd.f32 %v656, %v664
        %v671 = vadd.f32 %v657, %v666
        %v672 = vadd.f32 %v658, %v665
        %v673 = vsub.f32 %v656, %v664
        %v674 = vsub.f32 %v657, %v666
        %v675 = vsub.f32 %v658, %v665
        %v676 = vrot.slane %v656, 1
        %v677 = vrot.slane %v657, 1
        %v678 = vsel %vm242, %v676, %v677
        %v679 = vrot.slane %v658, 1
        %v680 = vsel %vm242, %v677, %v679
        %v684 = vadd.f32 %v656, %v678
        %v685 = vadd.f32 %v657, %v680
        %v686 = vadd.f32 %v658, %v679
        %v687 = vsub.f32 %v656, %v678
        %v688 = vsub.f32 %v657, %v680
        %v689 = vsub.f32 %v658, %v679
        %v690 = vmul.f32 %v670, 0.5
        %v691 = vmul.f32 %v671, 0.5
        %v692 = vmul.f32 %v672, 0.5
        %v693 = vmul.f32 %v684, 0.5
        %v694 = vmul.f32 %v685, 0.5
        %v695 = vmul.f32 %v686, 0.5
        %v699 = vrot.slane %v693, 1
        %v700 = vrot.slane %v694, 1
        %v701 = vsel %vm242, %v699, %v700
        %v702 = vrot.slane %v695, 1
        %v703 = vsel %vm242, %v700, %v702
        %v707 = vadd.f32 %v690, %v701
        %v708 = vadd.f32 %v691, %v703
        %v709 = vadd.f32 %v692, %v702
        %s710 = scalar_lea.vmem %s143, 72
        %711 = vst.msk [vmem:[%s710] sm:$0xff] %vm277, %v707
        %712 = vst.msk [vmem:[%s710 + $0x8] sm:$0xff] %vm277, %v708
        %713 = vst.msk [vmem:[%s710 + $0x10] sm:$0x7] %vm280, %v709
        %v714 = vmul.f32 %v673, 0.6532815
        %v715 = vmul.f32 %v674, 0.6532815
        %v716 = vmul.f32 %v675, 0.6532815
        %v717 = vmul.f32 %v687, 0.27059805
        %v718 = vmul.f32 %v688, 0.27059805
        %v719 = vmul.f32 %v689, 0.27059805
        %v723 = vrot.slane %v717, 1
        %v724 = vrot.slane %v718, 1
        %v725 = vsel %vm242, %v723, %v724
        %v726 = vrot.slane %v719, 1
        %v727 = vsel %vm242, %v724, %v726
        %v731 = vadd.f32 %v714, %v725
        %v732 = vadd.f32 %v715, %v727
        %v733 = vadd.f32 %v716, %v726
        %s734 = scalar_lea.vmem %s143, 168
        %735 = vst.msk [vmem:[%s734] sm:$0xff] %vm277, %v731
        %736 = vst.msk [vmem:[%s734 + $0x8] sm:$0xff] %vm277, %v732
        %737 = vst.msk [vmem:[%s734 + $0x10] sm:$0x7] %vm280, %v733
        %v738 = vmul.f32 %v684, -0.5
        %v739 = vmul.f32 %v685, -0.5
        %v740 = vmul.f32 %v686, -0.5
        %v744 = vrot.slane %v738, 1
        %v745 = vrot.slane %v739, 1
        %v746 = vsel %vm242, %v744, %v745
        %v747 = vrot.slane %v740, 1
        %v748 = vsel %vm242, %v745, %v747
        %v752 = vadd.f32 %v690, %v746
        %v753 = vadd.f32 %v691, %v748
        %v754 = vadd.f32 %v692, %v747
        %s755 = scalar_lea.vmem %s143, 264
        %756 = vst.msk [vmem:[%s755] sm:$0xff] %vm277, %v752
        %757 = vst.msk [vmem:[%s755 + $0x8] sm:$0xff] %vm277, %v753
        %758 = vst.msk [vmem:[%s755 + $0x10] sm:$0x7] %vm280, %v754
        %v759 = vmul.f32 %v673, 0.27059805
        %v760 = vmul.f32 %v674, 0.27059805
        %v761 = vmul.f32 %v675, 0.27059805
        %v762 = vmul.f32 %v687, -0.6532815
        %v763 = vmul.f32 %v688, -0.6532815
        %v764 = vmul.f32 %v689, -0.6532815
        %v768 = vrot.slane %v762, 1
        %v769 = vrot.slane %v763, 1
        %v770 = vsel %vm242, %v768, %v769
        %v771 = vrot.slane %v764, 1
        %v772 = vsel %vm242, %v769, %v771
        %v776 = vadd.f32 %v759, %v770
        %v777 = vadd.f32 %v760, %v772
        %v778 = vadd.f32 %v761, %v771
        %s779 = scalar_lea.vmem %s143, 360
        %780 = vst.msk [vmem:[%s779] sm:$0xff] %vm277, %v776
        %781 = vst.msk [vmem:[%s779 + $0x8] sm:$0xff] %vm277, %v777
        %782 = vst.msk [vmem:[%s779 + $0x10] sm:$0x7] %vm280, %v778
        %s783 = smul.u32 3, %s18
        %p784 = scmp.lt.s32.totalorder %s17, 1
        %s785 = scalar_select %p784, %s17, 1
        %p786 = scmp.lt.s32.totalorder %s783, 2
        %s787 = scalar_select %p786, %s783, 2
        %s788 = smul.addr %s785, 48
        %s789 = sadd.s32 %s787, %s788
        %s790 = smul.addr %s789, 8
        %s791 = scalar_lea.vmem %s1, %s790
        // Predicated region
        $region33: #{tpu_custom_call.1} parent=23 // pred_check
          %p792 = pneg %p71
        $region34: #{tpu_custom_call.1} parent=23 // pred_check_branch
          %794 = sbr.rel (%p792) target = $region36
        $region35: #{tpu_custom_call.1} parent=23 // pred_region
          %s795 = smul.u32 3, %s18
        $region36: #{tpu_custom_call.1} parent=23 // pred_fallthru
          _
      $region24: #{tpu_custom_call.1} parent=5 // pred_fallthru
        _
      %p796 = scmp.le.s32.totalorder 2, %s8
      // Predicated region
      $region37: #{tpu_custom_call.1} parent=5 // pred_check
        %p797 = pneg %p796
      $region38: #{tpu_custom_call.1} parent=5 // pred_check_branch
        %799 = sbr.rel (%p797) target = $region40
      $region39: #{tpu_custom_call.1} parent=5 // pred_region
        %s800 = ssub.s32 %s8, 2
        // Predicated region
        $region41: #{tpu_custom_call.1} parent=39 // pred_check
          %p801 = pneg %p77
        $region42: #{tpu_custom_call.1} parent=39 // pred_check_branch
          %803 = sbr.rel (%p801) target = $region44
        $region43: #{tpu_custom_call.1} parent=39 // pred_region
          %s804 = smul.u32 3, %s20
          %p805 = scmp.lt.s32.totalorder %s19, 1
          %s806 = scalar_select %p805, %s19, 1
          %p807 = scmp.lt.s32.totalorder %s804, 2
          %s808 = scalar_select %p807, %s804, 2
          %s809 = smul.addr %s806, 48
          %s810 = sadd.s32 %s808, %s809
          %s811 = smul.addr %s810, 8
          %s812 = scalar_lea.vmem %s1, %s811
        $region44: #{tpu_custom_call.1} parent=39 // pred_fallthru
          _
      $region40: #{tpu_custom_call.1} parent=5 // pred_fallthru
        _
    $region6: #{tpu_custom_call.1} parent=1 // loop_footer
      %s12 = sadd.s32 1, %s8
    $region7: #{tpu_custom_call.1} parent=1 // loop_footer_branch
      %7 = sbr.rel target = $region3
    $region8: #{tpu_custom_call.1} parent=1 // loop_exit
      _
    %813 = vsyncpa [#allocation4], 1
    %s814 = scalar_lea.sflag [#allocation4], 1
    %815 = vsyncpa %s814, 1

// kernel: tpu_custom_call.1
$region0: #{tpu_custom_call.1}
  #allocation0 [shape = 'u32[]', space=smem, size = 0x4, offset = 0x4, fixed_abs, tag = 'smem constant byte address 0x4 - core index']
  #allocation1 [shape = 'u32[72,128]{1,0:T(1,128)}', space=vmem, size = 0x9000, scoped, tag = 'internal scratch']
  #allocation2 [shape = 'f32[22,22]{1,0:T(8,128)}', space=vmem, size = 0x3000, scoped, tag = 'scratch operand']
  %s0 = inlined_call_operand.hbm [shape: f32[2,16,16], index: 0, kind: input, shape index: {}]
  %s1 = inlined_call_operand.vmem [shape: f32[2,16,19,19], index: 1, kind: output, shape index: {}]
  %s2 = sld [smem:[#allocation0]]
  $region45: #{tpu_custom_call.1} parent=0
    _
  %s4 = ssub.s32 1, %s2
  %s5 = scalar_select 0, %s4, %s2
  $region1: #{tpu_custom_call.1} parent=0
    #allocation3 [shape = 'u8[16384]{0}', space=vmem, size = 0x4000, scoped, tag = 'input window, operand 0']
    #allocation4 [shape = 's32[2]{0}', space=sflag, size = 0x8, scoped, tag = 'scoped memory for tpu_custom_call.1']
    %6 = vsyncpa [#allocation4], 0
    %s7 = scalar_lea.sflag [#allocation4], 1
    %8 = vsyncpa %s7, 0
    loop: start=0, step=1, limit=4
    $region2: #{tpu_custom_call.1} parent=1 // loop_pre_header
      _
    $region3: #{tpu_custom_call.1} parent=1 // loop_header
      %s10 = sphi 0, %s14
      %p11 = scmp.ge.s32.totalorder %s10, 4
      %s17 = sphi 0, %s29
      %s18 = sphi 0, %s25
      %s19 = sphi 0, %s17
      %s20 = sphi 0, %s18
      %s21 = sphi 0, %s19
      %s22 = sphi 0, %s20
      %s32 = sphi 0, %s34
      %s35 = sphi 0, %s32
      %s36 = sphi 0, %s35
      %s52 = sphi 0, %s36
      %s60 = sphi 0, %s62
      %s63 = sphi 0, %s60
      %s64 = sphi 0, %s63
      %s80 = sphi 0, %s64
    $region4: #{tpu_custom_call.1} parent=1 // loop_header_branch
      %13 = sbr.rel (%p11) target = $region8
    $region5: #{tpu_custom_call.1} parent=1 // loop_body
      %s15 = ssub.s32 %s10, 1
      %s16 = ssub.s32 %s10, 2
      %s23 = sadd.s32 1, %s18
      %p24 = scmp.ge.s32.totalorder %s23, 1
      %s25 = scalar_select %p24, 0, %s23
      %s26 = sadd.s32 1, %s17
      %s27 = scalar_select %p24, %s26, %s17
      %p28 = scmp.ge.s32.totalorder %s27, 2
      %s29 = scalar_select %p28, 0, %s27
      %s30 = ssub.s32 %s17, %s29
      %p31 = scmp.eq.s32.totalorder %s30, 0
      %s33 = sadd.s32 %s32, 1
      %s34 = scalar_select %p31, %s32, %s33
      %p37 = pneg %p31
      %p38 = scmp.eq.s32.totalorder %s10, 1
      %p39 = por %p37, %p38
      %p40 = scmp.ne.s32.totalorder %s32, %s35
      %p41 = scmp.eq.s32.totalorder %s10, 0
      %p42 = por %p40, %p41
      %p43 = scmp.ne.s32.totalorder %s32, %s35
      %p44 = scmp.eq.s32.totalorder %s15, 1
      %p45 = por %p43, %p44
      %p46 = scmp.ne.s32.totalorder %s35, %s36
      %p47 = scmp.eq.s32.totalorder %s15, 0
      %p48 = por %p46, %p47
      %p49 = scmp.ne.s32.totalorder %s35, %s36
      %p50 = scmp.eq.s32.totalorder %s16, 1
      %p51 = por %p49, %p50
      %p53 = scmp.ne.s32.totalorder %s36, %s52
      %p54 = scmp.eq.s32.totalorder %s16, 0
      %p55 = por %p53, %p54
      %s56 = ssub.s32 %s17, %s29
      %s57 = ssub.s32 %s18, %s25
      %s58 = sor.u32 %s56, %s57
      %p59 = scmp.eq.s32.totalorder %s58, 0
      %s61 = sadd.s32 %s60, 1
      %s62 = scalar_select %p59, %s60, %s61
      %p65 = pneg %p59
      %p66 = scmp.eq.s32.totalorder %s10, 1
      %p67 = por %p65, %p66
      %p68 = scmp.ne.s32.totalorder %s60, %s63
      %p69 = scmp.eq.s32.totalorder %s10, 0
      %p70 = por %p68, %p69
      %p71 = scmp.ne.s32.totalorder %s60, %s63
      %p72 = scmp.eq.s32.totalorder %s15, 1
      %p73 = por %p71, %p72
      %p74 = scmp.ne.s32.totalorder %s63, %s64
      %p75 = scmp.eq.s32.totalorder %s15, 0
      %p76 = por %p74, %p75
      %p77 = scmp.ne.s32.totalorder %s63, %s64
      %p78 = scmp.eq.s32.totalorder %s16, 1
      %p79 = por %p77, %p78
      %p81 = scmp.ne.s32.totalorder %s64, %s80
      %p82 = scmp.eq.s32.totalorder %s16, 0
      %p83 = por %p81, %p82
      %p84 = scmp.le.s32.totalorder 1, %s10
      %p85 = scmp.lt.s32.totalorder %s10, 3
      %p86 = pnand %p84, %p85
      %p87 = pneg %p86
      // Predicated region
      $region9: #{tpu_custom_call.1} parent=5 // pred_check
        _
      $region10: #{tpu_custom_call.1} parent=5 // pred_check_branch
        %89 = sbr.rel (%p86) target = $region12
      $region11: #{tpu_custom_call.1} parent=5 // pred_region
        %s90 = ssub.s32 %s10, 1
      $region12: #{tpu_custom_call.1} parent=5 // pred_fallthru
        _
      %p91 = scmp.lt.s32.totalorder %s10, 2
      // Predicated region
      $region13: #{tpu_custom_call.1} parent=5 // pred_check
        %p92 = pneg %p91
      $region14: #{tpu_custom_call.1} parent=5 // pred_check_branch
        %94 = sbr.rel (%p92) target = $region16
      $region15: #{tpu_custom_call.1} parent=5 // pred_region
        // Predicated region
        $region17: #{tpu_custom_call.1} parent=15 // pred_check
          %p95 = pneg %p42
        $region18: #{tpu_custom_call.1} parent=15 // pred_check_branch
          %97 = sbr.rel (%p95) target = $region20
        $region19: #{tpu_custom_call.1} parent=15 // pred_region
          %s98 = sand.u32 %s32, 1
          %s99 = scalar_lea.sflag [#allocation4], %s98
          %s100 = sand.u32 %s32, 1
          %s101 = smul.addr %s100, 16
          %s102 = scalar_lea.vmem [#allocation3], %s101
          %104 = vsyncadd %s99, 0
          %s105 = smul.addr %s17, 2
          %s106 = smul.addr %s105, 8
          %s107 = scalar_lea.hbm %s0, %s106
          %s108 = sshll.u32 %s107, 4
          %s109 = int_to_ptr.hbm [resolvable:$true] %s108
          %s110 = sshll.u32 %s102, 4
          %s111 = int_to_ptr.vmem [resolvable:$true] %s110
          %116 = dma.hbm_to_vmem [thread:$0]  %s109, 256, %s111, %s99, 128, 128, 8
        $region20: #{tpu_custom_call.1} parent=15 // pred_fallthru
          _
      $region16: #{tpu_custom_call.1} parent=5 // pred_fallthru
        _
      %p117 = scmp.le.s32.totalorder 1, %s10
      %p118 = scmp.lt.s32.totalorder %s10, 3
      %p119 = pnand %p117, %p118
      %p120 = pneg %p119
      // Predicated region
      $region21: #{tpu_custom_call.1} parent=5 // pred_check
        _
      $region22: #{tpu_custom_call.1} parent=5 // pred_check_branch
        %122 = sbr.rel (%p119) target = $region24
      $region23: #{tpu_custom_call.1} parent=5 // pred_region
        %s123 = ssub.s32 %s10, 1
        %s124 = sand.u32 %s35, 1
        %s125 = scalar_lea.sflag [#allocation4], %s124
        %s126 = sand.u32 %s35, 1
        %s127 = smul.addr %s126, 16
        %s128 = scalar_lea.vmem [#allocation3], %s127
        // Predicated region
        $region25: #{tpu_custom_call.1} parent=23 // pred_check
          %p129 = pneg %p48
        $region26: #{tpu_custom_call.1} parent=23 // pred_check_branch
          %131 = sbr.rel (%p129) target = $region28
        $region27: #{tpu_custom_call.1} parent=23 // pred_region
          %133 = dma.done %s125, 256
        $region28: #{tpu_custom_call.1} parent=23 // pred_fallthru
          _
        %s134 = sand.u32 %s35, 1
        %s135 = scalar_lea.sflag [#allocation4], %s134
        %s136 = sand.u32 %s35, 1
        %s137 = smul.addr %s136, 16
        %s138 = scalar_lea.vmem [#allocation3], %s137
        %p139 = pneg %p48
        %p140 = pneg %p45
        %p141 = pneg %p76
        %p142 = pneg %p73
        %s143 = smul.u32 3, %s20
        %p144 = scmp.lt.s32.totalorder %s19, 1
        %s145 = scalar_select %p144, %s19, 1
        %p146 = scmp.lt.s32.totalorder %s143, 2
        %s147 = scalar_select %p146, %s143, 2
        %s148 = smul.addr %s145, 48
        %s149 = sadd.s32 %s147, %s148
        %s150 = smul.addr %s149, 8
        %s151 = scalar_lea.vmem %s1, %s150
        %s152 = smul.u32 3, %s20
        %p153 = scmp.lt.s32.totalorder %s19, 1
        %s154 = scalar_select %p153, %s19, 1
        %p155 = scmp.lt.s32.totalorder %s152, 2
        %s156 = scalar_select %p155, %s152, 2
        %s157 = smul.addr %s154, 48
        %s158 = sadd.s32 %s156, %s157
        %s159 = smul.addr %s158, 8
        %s160 = scalar_lea.vmem %s1, %s159
        %s161 = smul.u32 3, %s20
        %p162 = scmp.eq.s32.totalorder %s20, 0
        // Predicated region
        $region29: #{tpu_custom_call.1} parent=23 // pred_check
          %p163 = pneg %p162
        $region30: #{tpu_custom_call.1} parent=23 // pred_check_branch
          %165 = sbr.rel (%p163) target = $region32
        $region31: #{tpu_custom_call.1} parent=23 // pred_region
          %vm166 = vcmask 179200
          %167 = vst.msk [vmem:[#allocation2] sm:$0xff] %vm166, 0.0
          %168 = vst.msk [vmem:[#allocation2 + $0x8] sm:$0xff] %vm166, 0.0
          %vm169 = vcmask 177152
          %170 = vst.msk [vmem:[#allocation2 + $0x10] sm:$0x3f] %vm169, 0.0
          %v171 = vld [vmem:[%s128] sm:$0xff]
          %v172 = vld [vmem:[%s128 + $0x8] sm:$0xff]
          %175 = vrot.lane.b32.xlu0 %v171, 3
          %v176 = vpop.permute.xlu0 %175
          %177 = vrot.lane.b32.xlu0 %v172, 3
          %v178 = vpop.permute.xlu0 %177
          %vm181 = vcmask 154648
          %182 = vst.msk [vmem:[#allocation2 + $0x3] sm:$0xff] %vm181, %v176
          %183 = vst.msk [vmem:[#allocation2 + $0xb] sm:$0xff] %vm181, %v178
        $region32: #{tpu_custom_call.1} parent=23 // pred_fallthru
          _
        %v184 = vld [vmem:[#allocation2] sm:$0xff]
        %v185 = vld [vmem:[#allocation2 + $0x8] sm:$0xff]
        %v186 = vld [vmem:[#allocation2 + $0x10] sm:$0x3f]
        %190 = vrot.lane.b32.xlu0 %v184, 125
        %v191 = vpop.permute.xlu0 %190
        %192 = vrot.lane.b32.xlu0 %v185, 125
        %v193 = vpop.permute.xlu0 %192
        %194 = vrot.lane.b32.xlu0 %v186, 125
        %v195 = vpop.permute.xlu0 %194
        %v199 = vadd.f32 %v184, %v191
        %v200 = vadd.f32 %v185, %v193
        %v201 = vadd.f32 %v186, %v195
        %v202 = vsub.f32 %v184, %v191
        %v203 = vsub.f32 %v185, %v193
        %v204 = vsub.f32 %v186, %v195
        %205 = vrot.lane.b32.xlu0 %v184, 127
        %v206 = vpop.permute.xlu0 %205
        %207 = vrot.lane.b32.xlu0 %v185, 127
        %v208 = vpop.permute.xlu0 %207
        %209 = vrot.lane.b32.xlu0 %v186, 127
        %v210 = vpop.permute.xlu0 %209
        %v214 = vadd.f32 %v184, %v206
        %v215 = vadd.f32 %v185, %v208
        %v216 = vadd.f32 %v186, %v210
        %v217 = vsub.f32 %v184, %v206
        %v218 = vsub.f32 %v185, %v208
        %v219 = vsub.f32 %v186, %v210
        %v220 = vmul.f32 %v199, 0.5
        %v221 = vmul.f32 %v200, 0.5
        %v222 = vmul.f32 %v201, 0.5
        %v223 = vmul.f32 %v214, 0.5
        %v224 = vmul.f32 %v215, 0.5
        %v225 = vmul.f32 %v216, 0.5
        %229 = vrot.lane.b32.xlu0 %v223, 127
        %v230 = vpop.permute.xlu0 %229
        %231 = vrot.lane.b32.xlu0 %v224, 127
        %v232 = vpop.permute.xlu0 %231
        %233 = vrot.lane.b32.xlu0 %v225, 127
        %v234 = vpop.permute.xlu0 %233
        %v238 = vadd.f32 %v220, %v230
        %v239 = vadd.f32 %v221, %v232
        %v240 = vadd.f32 %v222, %v234
        %vm244 = vcmask 1044480
        %v245 = vrot.slane %v238, 3
        %v246 = vrot.slane %v239, 3
        %v247 = vsel %vm244, %v245, %v246
        %v248 = vrot.slane %v240, 3
        %v249 = vsel %vm244, %v246, %v248
        %v253 = vadd.f32 %v238, %v247
        %v254 = vadd.f32 %v239, %v249
        %v255 = vadd.f32 %v240, %v248
        %v256 = vsub.f32 %v238, %v247
        %v257 = vsub.f32 %v239, %v249
        %v258 = vsub.f32 %v240, %v248
        %vm259 = vcmask 1046528
        %v260 = vrot.slane %v238, 1
        %v261 = vrot.slane %v239, 1
        %v262 = vsel %vm259, %v260, %v261
        %v263 = vrot.slane %v240, 1
        %v264 = vsel %vm259, %v261, %v263
        %v268 = vadd.f32 %v238, %v262
        %v269 = vadd.f32 %v239, %v264
        %v270 = vadd.f32 %v240, %v263
        %v271 = vsub.f32 %v238, %v262
        %v272 = vsub.f32 %v239, %v264
        %v273 = vsub.f32 %v240, %v263
        %v274 = vmul.f32 %v253, 0.5
        %v275 = vmul.f32 %v254, 0.5
        %v276 = vmul.f32 %v255, 0.5
        %v277 = vmul.f32 %v268, 0.5
        %v278 = vmul.f32 %v269, 0.5
        %v279 = vmul.f32 %v270, 0.5
        %v283 = vrot.slane %v277, 1
        %v284 = vrot.slane %v278, 1
        %v285 = vsel %vm259, %v283, %v284
        %v286 = vrot.slane %v279, 1
        %v287 = vsel %vm259, %v284, %v286
        %v291 = vadd.f32 %v274, %v285
        %v292 = vadd.f32 %v275, %v287
        %v293 = vadd.f32 %v276, %v286
        %vm294 = vcmask 154624
        %295 = vst.msk [vmem:[%s160] sm:$0xff] %vm294, %v291
        %296 = vst.msk [vmem:[%s160 + $0x8] sm:$0xff] %vm294, %v292
        %vm297 = vcmask 149504
        %298 = vst.msk [vmem:[%s160 + $0x10] sm:$0x7] %vm297, %v293
        %v299 = vmul.f32 %v256, 0.6532815
        %v300 = vmul.f32 %v257, 0.6532815
        %v301 = vmul.f32 %v258, 0.6532815
        %v302 = vmul.f32 %v271, 0.27059805
        %v303 = vmul.f32 %v272, 0.27059805
        %v304 = vmul.f32 %v273, 0.27059805
        %v308 = vrot.slane %v302, 1
        %v309 = vrot.slane %v303, 1
        %v310 = vsel %vm259, %v308, %v309
        %v311 = vrot.slane %v304, 1
        %v312 = vsel %vm259, %v309, %v311
        %v316 = vadd.f32 %v299, %v310
        %v317 = vadd.f32 %v300, %v312
        %v318 = vadd.f32 %v301, %v311
        %s319 = scalar_lea.vmem %s160, 96
        %320 = vst.msk [vmem:[%s319] sm:$0xff] %vm294, %v316
        %321 = vst.msk [vmem:[%s319 + $0x8] sm:$0xff] %vm294, %v317
        %322 = vst.msk [vmem:[%s319 + $0x10] sm:$0x7] %vm297, %v318
        %v323 = vmul.f32 %v268, -0.5
        %v324 = vmul.f32 %v269, -0.5
        %v325 = vmul.f32 %v270, -0.5
        %v329 = vrot.slane %v323, 1
        %v330 = vrot.slane %v324, 1
        %v331 = vsel %vm259, %v329, %v330
        %v332 = vrot.slane %v325, 1
        %v333 = vsel %vm259, %v330, %v332
        %v337 = vadd.f32 %v274, %v331
        %v338 = vadd.f32 %v275, %v333
        %v339 = vadd.f32 %v276, %v332
        %s340 = scalar_lea.vmem %s160, 192
        %341 = vst.msk [vmem:[%s340] sm:$0xff] %vm294, %v337
        %342 = vst.msk [vmem:[%s340 + $0x8] sm:$0xff] %vm294, %v338
        %343 = vst.msk [vmem:[%s340 + $0x10] sm:$0x7] %vm297, %v339
        %v344 = vmul.f32 %v256, 0.27059805
        %v345 = vmul.f32 %v257, 0.27059805
        %v346 = vmul.f32 %v258, 0.27059805
        %v347 = vmul.f32 %v271, -0.6532815
        %v348 = vmul.f32 %v272, -0.6532815
        %v349 = vmul.f32 %v273, -0.6532815
        %v353 = vrot.slane %v347, 1
        %v354 = vrot.slane %v348, 1
        %v355 = vsel %vm259, %v353, %v354
        %v356 = vrot.slane %v349, 1
        %v357 = vsel %vm259, %v354, %v356
        %v361 = vadd.f32 %v344, %v355
        %v362 = vadd.f32 %v345, %v357
        %v363 = vadd.f32 %v346, %v356
        %s364 = scalar_lea.vmem %s160, 288
        %365 = vst.msk [vmem:[%s364] sm:$0xff] %vm294, %v361
        %366 = vst.msk [vmem:[%s364 + $0x8] sm:$0xff] %vm294, %v362
        %367 = vst.msk [vmem:[%s364 + $0x10] sm:$0x7] %vm297, %v363
        %v368 = vmul.f32 %v202, 0.6532815
        %v369 = vmul.f32 %v203, 0.6532815
        %v370 = vmul.f32 %v204, 0.6532815
        %v371 = vmul.f32 %v217, 0.27059805
        %v372 = vmul.f32 %v218, 0.27059805
        %v373 = vmul.f32 %v219, 0.27059805
        %377 = vrot.lane.b32.xlu0 %v371, 127
        %v378 = vpop.permute.xlu0 %377
        %379 = vrot.lane.b32.xlu0 %v372, 127
        %v380 = vpop.permute.xlu0 %379
        %381 = vrot.lane.b32.xlu0 %v373, 127
        %v382 = vpop.permute.xlu0 %381
        %v386 = vadd.f32 %v368, %v378
        %v387 = vadd.f32 %v369, %v380
        %v388 = vadd.f32 %v370, %v382
        %v392 = vrot.slane %v386, 3
        %v393 = vrot.slane %v387, 3
        %v394 = vsel %vm244, %v392, %v393
        %v395 = vrot.slane %v388, 3
        %v396 = vsel %vm244, %v393, %v395
        %v400 = vadd.f32 %v386, %v394
        %v401 = vadd.f32 %v387, %v396
        %v402 = vadd.f32 %v388, %v395
        %v403 = vsub.f32 %v386, %v394
        %v404 = vsub.f32 %v387, %v396
        %v405 = vsub.f32 %v388, %v395
        %v406 = vrot.slane %v386, 1
        %v407 = vrot.slane %v387, 1
        %v408 = vsel %vm259, %v406, %v407
        %v409 = vrot.slane %v388, 1
        %v410 = vsel %vm259, %v407, %v409
        %v414 = vadd.f32 %v386, %v408
        %v415 = vadd.f32 %v387, %v410
        %v416 = vadd.f32 %v388, %v409
        %v417 = vsub.f32 %v386, %v408
        %v418 = vsub.f32 %v387, %v410
        %v419 = vsub.f32 %v388, %v409
        %v420 = vmul.f32 %v400, 0.5
        %v421 = vmul.f32 %v401, 0.5
        %v422 = vmul.f32 %v402, 0.5
        %v423 = vmul.f32 %v414, 0.5
        %v424 = vmul.f32 %v415, 0.5
        %v425 = vmul.f32 %v416, 0.5
        %v429 = vrot.slane %v423, 1
        %v430 = vrot.slane %v424, 1
        %v431 = vsel %vm259, %v429, %v430
        %v432 = vrot.slane %v425, 1
        %v433 = vsel %vm259, %v430, %v432
        %v437 = vadd.f32 %v420, %v431
        %v438 = vadd.f32 %v421, %v433
        %v439 = vadd.f32 %v422, %v432
        %s440 = scalar_lea.vmem %s160, 24
        %441 = vst.msk [vmem:[%s440] sm:$0xff] %vm294, %v437
        %442 = vst.msk [vmem:[%s440 + $0x8] sm:$0xff] %vm294, %v438
        %443 = vst.msk [vmem:[%s440 + $0x10] sm:$0x7] %vm297, %v439
        %v444 = vmul.f32 %v403, 0.6532815
        %v445 = vmul.f32 %v404, 0.6532815
        %v446 = vmul.f32 %v405, 0.6532815
        %v447 = vmul.f32 %v417, 0.27059805
        %v448 = vmul.f32 %v418, 0.27059805
        %v449 = vmul.f32 %v419, 0.27059805
        %v453 = vrot.slane %v447, 1
        %v454 = vrot.slane %v448, 1
        %v455 = vsel %vm259, %v453, %v454
        %v456 = vrot.slane %v449, 1
        %v457 = vsel %vm259, %v454, %v456
        %v461 = vadd.f32 %v444, %v455
        %v462 = vadd.f32 %v445, %v457
        %v463 = vadd.f32 %v446, %v456
        %s464 = scalar_lea.vmem %s160, 120
        %465 = vst.msk [vmem:[%s464] sm:$0xff] %vm294, %v461
        %466 = vst.msk [vmem:[%s464 + $0x8] sm:$0xff] %vm294, %v462
        %467 = vst.msk [vmem:[%s464 + $0x10] sm:$0x7] %vm297, %v463
        %v468 = vmul.f32 %v414, -0.5
        %v469 = vmul.f32 %v415, -0.5
        %v470 = vmul.f32 %v416, -0.5
        %v474 = vrot.slane %v468, 1
        %v475 = vrot.slane %v469, 1
        %v476 = vsel %vm259, %v474, %v475
        %v477 = vrot.slane %v470, 1
        %v478 = vsel %vm259, %v475, %v477
        %v482 = vadd.f32 %v420, %v476
        %v483 = vadd.f32 %v421, %v478
        %v484 = vadd.f32 %v422, %v477
        %s485 = scalar_lea.vmem %s160, 216
        %486 = vst.msk [vmem:[%s485] sm:$0xff] %vm294, %v482
        %487 = vst.msk [vmem:[%s485 + $0x8] sm:$0xff] %vm294, %v483
        %488 = vst.msk [vmem:[%s485 + $0x10] sm:$0x7] %vm297, %v484
        %v489 = vmul.f32 %v403, 0.27059805
        %v490 = vmul.f32 %v404, 0.27059805
        %v491 = vmul.f32 %v405, 0.27059805
        %v492 = vmul.f32 %v417, -0.6532815
        %v493 = vmul.f32 %v418, -0.6532815
        %v494 = vmul.f32 %v419, -0.6532815
        %v498 = vrot.slane %v492, 1
        %v499 = vrot.slane %v493, 1
        %v500 = vsel %vm259, %v498, %v499
        %v501 = vrot.slane %v494, 1
        %v502 = vsel %vm259, %v499, %v501
        %v506 = vadd.f32 %v489, %v500
        %v507 = vadd.f32 %v490, %v502
        %v508 = vadd.f32 %v491, %v501
        %s509 = scalar_lea.vmem %s160, 312
        %510 = vst.msk [vmem:[%s509] sm:$0xff] %vm294, %v506
        %511 = vst.msk [vmem:[%s509 + $0x8] sm:$0xff] %vm294, %v507
        %512 = vst.msk [vmem:[%s509 + $0x10] sm:$0x7] %vm297, %v508
        %v513 = vmul.f32 %v214, -0.5
        %v514 = vmul.f32 %v215, -0.5
        %v515 = vmul.f32 %v216, -0.5
        %519 = vrot.lane.b32.xlu0 %v513, 127
        %v520 = vpop.permute.xlu0 %519
        %521 = vrot.lane.b32.xlu0 %v514, 127
        %v522 = vpop.permute.xlu0 %521
        %523 = vrot.lane.b32.xlu0 %v515, 127
        %v524 = vpop.permute.xlu0 %523
        %v528 = vadd.f32 %v220, %v520
        %v529 = vadd.f32 %v221, %v522
        %v530 = vadd.f32 %v222, %v524
        %v534 = vrot.slane %v528, 3
        %v535 = vrot.slane %v529, 3
        %v536 = vsel %vm244, %v534, %v535
        %v537 = vrot.slane %v530, 3
        %v538 = vsel %vm244, %v535, %v537
        %v542 = vadd.f32 %v528, %v536
        %v543 = vadd.f32 %v529, %v538
        %v544 = vadd.f32 %v530, %v537
        %v545 = vsub.f32 %v528, %v536
        %v546 = vsub.f32 %v529, %v538
        %v547 = vsub.f32 %v530, %v537
        %v548 = vrot.slane %v528, 1
        %v549 = vrot.slane %v529, 1
        %v550 = vsel %vm259, %v548, %v549
        %v551 = vrot.slane %v530, 1
        %v552 = vsel %vm259, %v549, %v551
        %v556 = vadd.f32 %v528, %v550
        %v557 = vadd.f32 %v529, %v552
        %v558 = vadd.f32 %v530, %v551
        %v559 = vsub.f32 %v528, %v550
        %v560 = vsub.f32 %v529, %v552
        %v561 = vsub.f32 %v530, %v551
        %v562 = vmul.f32 %v542, 0.5
        %v563 = vmul.f32 %v543, 0.5
        %v564 = vmul.f32 %v544, 0.5
        %v565 = vmul.f32 %v556, 0.5
        %v566 = vmul.f32 %v557, 0.5
        %v567 = vmul.f32 %v558, 0.5
        %v571 = vrot.slane %v565, 1
        %v572 = vrot.slane %v566, 1
        %v573 = vsel %vm259, %v571, %v572
        %v574 = vrot.slane %v567, 1
        %v575 = vsel %vm259, %v572, %v574
        %v579 = vadd.f32 %v562, %v573
        %v580 = vadd.f32 %v563, %v575
        %v581 = vadd.f32 %v564, %v574
        %s582 = scalar_lea.vmem %s160, 48
        %583 = vst.msk [vmem:[%s582] sm:$0xff] %vm294, %v579
        %584 = vst.msk [vmem:[%s582 + $0x8] sm:$0xff] %vm294, %v580
        %585 = vst.msk [vmem:[%s582 + $0x10] sm:$0x7] %vm297, %v581
        %v586 = vmul.f32 %v545, 0.6532815
        %v587 = vmul.f32 %v546, 0.6532815
        %v588 = vmul.f32 %v547, 0.6532815
        %v589 = vmul.f32 %v559, 0.27059805
        %v590 = vmul.f32 %v560, 0.27059805
        %v591 = vmul.f32 %v561, 0.27059805
        %v595 = vrot.slane %v589, 1
        %v596 = vrot.slane %v590, 1
        %v597 = vsel %vm259, %v595, %v596
        %v598 = vrot.slane %v591, 1
        %v599 = vsel %vm259, %v596, %v598
        %v603 = vadd.f32 %v586, %v597
        %v604 = vadd.f32 %v587, %v599
        %v605 = vadd.f32 %v588, %v598
        %s606 = scalar_lea.vmem %s160, 144
        %607 = vst.msk [vmem:[%s606] sm:$0xff] %vm294, %v603
        %608 = vst.msk [vmem:[%s606 + $0x8] sm:$0xff] %vm294, %v604
        %609 = vst.msk [vmem:[%s606 + $0x10] sm:$0x7] %vm297, %v605
        %v610 = vmul.f32 %v556, -0.5
        %v611 = vmul.f32 %v557, -0.5
        %v612 = vmul.f32 %v558, -0.5
        %v616 = vrot.slane %v610, 1
        %v617 = vrot.slane %v611, 1
        %v618 = vsel %vm259, %v616, %v617
        %v619 = vrot.slane %v612, 1
        %v620 = vsel %vm259, %v617, %v619
        %v624 = vadd.f32 %v562, %v618
        %v625 = vadd.f32 %v563, %v620
        %v626 = vadd.f32 %v564, %v619
        %s627 = scalar_lea.vmem %s160, 240
        %628 = vst.msk [vmem:[%s627] sm:$0xff] %vm294, %v624
        %629 = vst.msk [vmem:[%s627 + $0x8] sm:$0xff] %vm294, %v625
        %630 = vst.msk [vmem:[%s627 + $0x10] sm:$0x7] %vm297, %v626
        %v631 = vmul.f32 %v545, 0.27059805
        %v632 = vmul.f32 %v546, 0.27059805
        %v633 = vmul.f32 %v547, 0.27059805
        %v634 = vmul.f32 %v559, -0.6532815
        %v635 = vmul.f32 %v560, -0.6532815
        %v636 = vmul.f32 %v561, -0.6532815
        %v640 = vrot.slane %v634, 1
        %v641 = vrot.slane %v635, 1
        %v642 = vsel %vm259, %v640, %v641
        %v643 = vrot.slane %v636, 1
        %v644 = vsel %vm259, %v641, %v643
        %v648 = vadd.f32 %v631, %v642
        %v649 = vadd.f32 %v632, %v644
        %v650 = vadd.f32 %v633, %v643
        %s651 = scalar_lea.vmem %s160, 336
        %652 = vst.msk [vmem:[%s651] sm:$0xff] %vm294, %v648
        %653 = vst.msk [vmem:[%s651 + $0x8] sm:$0xff] %vm294, %v649
        %654 = vst.msk [vmem:[%s651 + $0x10] sm:$0x7] %vm297, %v650
        %v655 = vmul.f32 %v202, 0.27059805
        %v656 = vmul.f32 %v203, 0.27059805
        %v657 = vmul.f32 %v204, 0.27059805
        %v658 = vmul.f32 %v217, -0.6532815
        %v659 = vmul.f32 %v218, -0.6532815
        %v660 = vmul.f32 %v219, -0.6532815
        %664 = vrot.lane.b32.xlu0 %v658, 127
        %v665 = vpop.permute.xlu0 %664
        %666 = vrot.lane.b32.xlu0 %v659, 127
        %v667 = vpop.permute.xlu0 %666
        %668 = vrot.lane.b32.xlu0 %v660, 127
        %v669 = vpop.permute.xlu0 %668
        %v673 = vadd.f32 %v655, %v665
        %v674 = vadd.f32 %v656, %v667
        %v675 = vadd.f32 %v657, %v669
        %v679 = vrot.slane %v673, 3
        %v680 = vrot.slane %v674, 3
        %v681 = vsel %vm244, %v679, %v680
        %v682 = vrot.slane %v675, 3
        %v683 = vsel %vm244, %v680, %v682
        %v687 = vadd.f32 %v673, %v681
        %v688 = vadd.f32 %v674, %v683
        %v689 = vadd.f32 %v675, %v682
        %v690 = vsub.f32 %v673, %v681
        %v691 = vsub.f32 %v674, %v683
        %v692 = vsub.f32 %v675, %v682
        %v693 = vrot.slane %v673, 1
        %v694 = vrot.slane %v674, 1
        %v695 = vsel %vm259, %v693, %v694
        %v696 = vrot.slane %v675, 1
        %v697 = vsel %vm259, %v694, %v696
        %v701 = vadd.f32 %v673, %v695
        %v702 = vadd.f32 %v674, %v697
        %v703 = vadd.f32 %v675, %v696
        %v704 = vsub.f32 %v673, %v695
        %v705 = vsub.f32 %v674, %v697
        %v706 = vsub.f32 %v675, %v696
        %v707 = vmul.f32 %v687, 0.5
        %v708 = vmul.f32 %v688, 0.5
        %v709 = vmul.f32 %v689, 0.5
        %v710 = vmul.f32 %v701, 0.5
        %v711 = vmul.f32 %v702, 0.5
        %v712 = vmul.f32 %v703, 0.5
        %v716 = vrot.slane %v710, 1
        %v717 = vrot.slane %v711, 1
        %v718 = vsel %vm259, %v716, %v717
        %v719 = vrot.slane %v712, 1
        %v720 = vsel %vm259, %v717, %v719
        %v724 = vadd.f32 %v707, %v718
        %v725 = vadd.f32 %v708, %v720
        %v726 = vadd.f32 %v709, %v719
        %s727 = scalar_lea.vmem %s160, 72
        %728 = vst.msk [vmem:[%s727] sm:$0xff] %vm294, %v724
        %729 = vst.msk [vmem:[%s727 + $0x8] sm:$0xff] %vm294, %v725
        %730 = vst.msk [vmem:[%s727 + $0x10] sm:$0x7] %vm297, %v726
        %v731 = vmul.f32 %v690, 0.6532815
        %v732 = vmul.f32 %v691, 0.6532815
        %v733 = vmul.f32 %v692, 0.6532815
        %v734 = vmul.f32 %v704, 0.27059805
        %v735 = vmul.f32 %v705, 0.27059805
        %v736 = vmul.f32 %v706, 0.27059805
        %v740 = vrot.slane %v734, 1
        %v741 = vrot.slane %v735, 1
        %v742 = vsel %vm259, %v740, %v741
        %v743 = vrot.slane %v736, 1
        %v744 = vsel %vm259, %v741, %v743
        %v748 = vadd.f32 %v731, %v742
        %v749 = vadd.f32 %v732, %v744
        %v750 = vadd.f32 %v733, %v743
        %s751 = scalar_lea.vmem %s160, 168
        %752 = vst.msk [vmem:[%s751] sm:$0xff] %vm294, %v748
        %753 = vst.msk [vmem:[%s751 + $0x8] sm:$0xff] %vm294, %v749
        %754 = vst.msk [vmem:[%s751 + $0x10] sm:$0x7] %vm297, %v750
        %v755 = vmul.f32 %v701, -0.5
        %v756 = vmul.f32 %v702, -0.5
        %v757 = vmul.f32 %v703, -0.5
        %v761 = vrot.slane %v755, 1
        %v762 = vrot.slane %v756, 1
        %v763 = vsel %vm259, %v761, %v762
        %v764 = vrot.slane %v757, 1
        %v765 = vsel %vm259, %v762, %v764
        %v769 = vadd.f32 %v707, %v763
        %v770 = vadd.f32 %v708, %v765
        %v771 = vadd.f32 %v709, %v764
        %s772 = scalar_lea.vmem %s160, 264
        %773 = vst.msk [vmem:[%s772] sm:$0xff] %vm294, %v769
        %774 = vst.msk [vmem:[%s772 + $0x8] sm:$0xff] %vm294, %v770
        %775 = vst.msk [vmem:[%s772 + $0x10] sm:$0x7] %vm297, %v771
        %v776 = vmul.f32 %v690, 0.27059805
        %v777 = vmul.f32 %v691, 0.27059805
        %v778 = vmul.f32 %v692, 0.27059805
        %v779 = vmul.f32 %v704, -0.6532815
        %v780 = vmul.f32 %v705, -0.6532815
        %v781 = vmul.f32 %v706, -0.6532815
        %v785 = vrot.slane %v779, 1
        %v786 = vrot.slane %v780, 1
        %v787 = vsel %vm259, %v785, %v786
        %v788 = vrot.slane %v781, 1
        %v789 = vsel %vm259, %v786, %v788
        %v793 = vadd.f32 %v776, %v787
        %v794 = vadd.f32 %v777, %v789
        %v795 = vadd.f32 %v778, %v788
        %s796 = scalar_lea.vmem %s160, 360
        %797 = vst.msk [vmem:[%s796] sm:$0xff] %vm294, %v793
        %798 = vst.msk [vmem:[%s796 + $0x8] sm:$0xff] %vm294, %v794
        %799 = vst.msk [vmem:[%s796 + $0x10] sm:$0x7] %vm297, %v795
        %s800 = smul.u32 3, %s20
        %p801 = scmp.lt.s32.totalorder %s19, 1
        %s802 = scalar_select %p801, %s19, 1
        %p803 = scmp.lt.s32.totalorder %s800, 2
        %s804 = scalar_select %p803, %s800, 2
        %s805 = smul.addr %s802, 48
        %s806 = sadd.s32 %s804, %s805
        %s807 = smul.addr %s806, 8
        %s808 = scalar_lea.vmem %s1, %s807
        // Predicated region
        $region33: #{tpu_custom_call.1} parent=23 // pred_check
          %p809 = pneg %p73
        $region34: #{tpu_custom_call.1} parent=23 // pred_check_branch
          %811 = sbr.rel (%p809) target = $region36
        $region35: #{tpu_custom_call.1} parent=23 // pred_region
          %s812 = smul.u32 3, %s20
        $region36: #{tpu_custom_call.1} parent=23 // pred_fallthru
          _
      $region24: #{tpu_custom_call.1} parent=5 // pred_fallthru
        _
      %p813 = scmp.le.s32.totalorder 2, %s10
      // Predicated region
      $region37: #{tpu_custom_call.1} parent=5 // pred_check
        %p814 = pneg %p813
      $region38: #{tpu_custom_call.1} parent=5 // pred_check_branch
        %816 = sbr.rel (%p814) target = $region40
      $region39: #{tpu_custom_call.1} parent=5 // pred_region
        %s817 = ssub.s32 %s10, 2
        // Predicated region
        $region41: #{tpu_custom_call.1} parent=39 // pred_check
          %p818 = pneg %p79
        $region42: #{tpu_custom_call.1} parent=39 // pred_check_branch
          %820 = sbr.rel (%p818) target = $region44
        $region43: #{tpu_custom_call.1} parent=39 // pred_region
          %s821 = smul.u32 3, %s22
          %p822 = scmp.lt.s32.totalorder %s21, 1
          %s823 = scalar_select %p822, %s21, 1
          %p824 = scmp.lt.s32.totalorder %s821, 2
          %s825 = scalar_select %p824, %s821, 2
          %s826 = smul.addr %s823, 48
          %s827 = sadd.s32 %s825, %s826
          %s828 = smul.addr %s827, 8
          %s829 = scalar_lea.vmem %s1, %s828
        $region44: #{tpu_custom_call.1} parent=39 // pred_fallthru
          _
      $region40: #{tpu_custom_call.1} parent=5 // pred_fallthru
        _
    $region6: #{tpu_custom_call.1} parent=1 // loop_footer
      %s14 = sadd.s32 1, %s10
    $region7: #{tpu_custom_call.1} parent=1 // loop_footer_branch
      %9 = sbr.rel target = $region3
    $region8: #{tpu_custom_call.1} parent=1 // loop_exit
      _
    %830 = vsyncpa [#allocation4], 1
    %s831 = scalar_lea.sflag [#allocation4], 1
    %832 = vsyncpa %s831, 1

</llo_original>
